<compile_context>
chip_gen: v7x
topology: tpu7x:2x2x1
jax: 0.10.0
libtpu: 0.0.40
codegen_flags: <defaults>
</compile_context>

<pallas_src>
import jax
import jax.numpy as jnp
from jax.experimental import pallas as pl
from jax.experimental.pallas import tpu as pltpu


# (output phase, 3x3-window row offset) -> ConvTranspose kernel row index
# (specific to k=4, s=2, p=1, output_padding=0; same table is used for columns)
_KSEL = {(0, 0): 3, (0, 1): 1, (1, 1): 2, (1, 2): 0}


def _phase_weight_matrix(weight, ncols, dtype):
    """torch ConvTranspose2d weight (Cin, Cout, 4, 4) -> (9*Cin, ncols) matrix
    of the equivalent 3x3 conv producing 4*Cout phase channels (cols zero-padded
    up to ncols so the kernel output stays lane-dense)."""
    Cin, Cout, K, _ = weight.shape
    w9 = jnp.zeros((3, 3, Cin, 2, 2, Cout), jnp.float32)
    for dy in range(2):
        for dx in range(2):
            for ry in range(3):
                ky = _KSEL.get((dy, ry))
                if ky is None:
                    continue
                for rx in range(3):
                    kx = _KSEL.get((dx, rx))
                    if kx is None:
                        continue
                    w9 = w9.at[ry, rx, :, dy, dx, :].set(
                        weight[:, :, ky, kx].astype(jnp.float32))
    wmat = w9.reshape(9 * Cin, 4 * Cout)          # rows: (ry,rx,ci)  cols: (dy,dx,co)
    wmat = jnp.pad(wmat, ((0, 0), (0, ncols - 4 * Cout)))
    return wmat.astype(dtype)


def _pick_tile_cols(Cin, ncols, itemsize, budget_bytes=12 * 1024 * 1024):
    """Largest multiple-of-128 divisor of ncols whose double-buffered weight
    block fits the budget (falls back to 128, which always divides ncols)."""
    cands = [c for c in range(128, ncols + 1, 128) if ncols % c == 0]
    fitting = [c for c in cands if 2 * 9 * Cin * c * itemsize <= budget_bytes]
    return max(fitting) if fitting else 128


def _pick_tile_rows(H, W, Cin, tn, itemsize, budget_bytes=20 * 1024 * 1024):
    """Largest divisor of H whose VMEM working set fits a conservative budget
    (safe across v5e/v6e/v7x scoped-VMEM defaults) and keeps blocks sublane-legal."""
    wblk = 2 * 9 * Cin * tn * itemsize
    def tile_bytes(th):
        xblk = 2 * (th + 2) * (W + 2) * Cin * itemsize   # double-buffered input tile
        oblk = 2 * th * W * tn * 4                       # double-buffered f32 output tile
        patch = th * W * 9 * Cin * itemsize              # im2col scratch
        acc = th * W * tn * 4                            # f32 accumulator (transient)
        return wblk + xblk + oblk + patch + acc
    cands = [th for th in range(1, H + 1)
             if H % th == 0 and (th == H or (th * W) % 8 == 0)]
    fitting = [th for th in cands if tile_bytes(th) <= budget_bytes]
    return max(fitting) if fitting else min(cands)


def _upconv_phase_kernel(x_ref, w_ref, o_ref, patch):
    # x_ref : (1, TH+2, W+2, Cin)  haloed input row tile (auto-pipelined)
    # w_ref : (9*Cin, TN)          phase-weight column tile (auto-pipelined / resident)
    # o_ref : (1, TH*W, TN)        lane-dense output tile (TN multiple of 128)
    # patch : (TH*W, 9*Cin)        VMEM scratch: im2col patch (persists across j)
    TH = x_ref.shape[1] - 2
    W = x_ref.shape[2] - 2
    Cin = x_ref.shape[3]

    # Build the im2col patch once per row tile (j is the innermost, sequential
    # output-column axis, so j==0 always runs first for this (n, t) on this core).
    @pl.when(pl.program_id(2) == 0)
    def _():
        for ry in range(3):
            for rx in range(3):
                win = x_ref[0, pl.ds(ry, TH), pl.ds(rx, W), :]        # (TH, W, Cin)
                patch[:, pl.ds((ry * 3 + rx) * Cin, Cin)] = win.reshape(TH * W, Cin)

    # One MXU matmul over the full 9*Cin contraction, f32 accumulation.
    acc = jnp.dot(patch[...], w_ref[...], preferred_element_type=jnp.float32)
    acc = jnp.where(acc >= 0, acc, 0.1 * acc)                         # LeakyReLU(0.1), f32
    o_ref[0] = acc.astype(o_ref.dtype)


def upconv_layer(x_nchw, weight, *, kernel_size=4, stride=2, padding=1,
                 output_padding=0, compute_dtype=jnp.bfloat16,
                 tile_rows=None, tile_cols=None):
    """Forward pass of UpConvLayer.
    x_nchw: (N, Cin, H, W); weight: (Cin, Cout, K, K) (torch ConvTranspose2d layout)."""
    if not (kernel_size == 4 and stride == 2 and padding == 1 and output_padding == 0):
        # TODO(synk): generic (k, s, p, op) phase decomposition; FlowNet only uses 4/2/1/0.
        raise NotImplementedError("phase-decomposed kernel assumes k=4, s=2, p=1, op=0")

    N, Cin, H, W = x_nchw.shape
    Cin_w, Cout, K, _ = weight.shape
    assert Cin == Cin_w and K == kernel_size

    ncols = ((4 * Cout + 127) // 128) * 128          # lane-dense output width
    itemsize = jnp.dtype(compute_dtype).itemsize

    TN = tile_cols if tile_cols is not None else _pick_tile_cols(Cin, ncols, itemsize)
    assert ncols % TN == 0 and TN % 128 == 0, (ncols, TN)
    TH = tile_rows if tile_rows is not None else _pick_tile_rows(H, W, Cin, TN, itemsize)
    assert H % TH == 0 and (TH == H or (TH * W) % 8 == 0), (H, W, TH)
    T = H // TH

    # ---- glue (plain JAX, layout plumbing only): NCHW -> NHWC, +1 spatial
    # zero-pad, bf16 operands, and pre-sliced overlapping (TH+2)-row windows so
    # the Pallas pipeline can auto double-buffer the haloed input tiles.
    x_nhwc = jnp.transpose(x_nchw, (0, 2, 3, 1))
    x_pad = jnp.pad(x_nhwc, ((0, 0), (1, 1), (1, 1), (0, 0))).astype(compute_dtype)
    tiles = jnp.concatenate(
        [x_pad[:, t * TH:t * TH + TH + 2][:, None] for t in range(T)], axis=1)
    tiles = tiles.reshape(N * T, TH + 2, W + 2, Cin)
    wmat = _phase_weight_matrix(weight, ncols, compute_dtype)

    flops = 2 * N * H * W * (9 * Cin) * ncols
    bytes_accessed = int(tiles.size) * itemsize + int(wmat.size) * itemsize \
        + N * H * W * ncols * 4

    out_flat = pl.pallas_call(
        _upconv_phase_kernel,
        out_shape=jax.ShapeDtypeStruct((N, H * W, ncols), jnp.float32),
        grid_spec=pltpu.PrefetchScalarGridSpec(
            num_scalar_prefetch=0,
            grid=(N, T, ncols // TN),
            in_specs=[
                pl.BlockSpec((1, TH + 2, W + 2, Cin),
                             lambda n, t, j: (n * T + t, 0, 0, 0)),   # haloed row tile
                pl.BlockSpec((9 * Cin, TN), lambda n, t, j: (0, j)),  # weight column tile
            ],
            out_specs=pl.BlockSpec((1, TH * W, TN), lambda n, t, j: (n, t, j)),
            scratch_shapes=[
                pltpu.VMEM((TH * W, 9 * Cin), compute_dtype),         # im2col patch
            ]),
        compiler_params=pltpu.CompilerParams(
            dimension_semantics=("parallel", "parallel", "arbitrary"),
            vmem_limit_bytes=32 * 1024 * 1024),
        cost_estimate=pl.CostEstimate(flops=flops, transcendentals=0,
                                      bytes_accessed=bytes_accessed),
    )(tiles, wmat)

    # ---- pixel shuffle (phase channels -> spatial) + back to NCHW.
    out = out_flat[:, :, :4 * Cout].reshape(N, H, W, 2, 2, Cout)  # (n, iy, ix, dy, dx, co)
    out = jnp.transpose(out, (0, 5, 1, 3, 2, 4))                  # (n, co, iy, dy, ix, dx)
    return out.reshape(N, Cout, 2 * H, 2 * W)


if __name__ == "__main__":
    key = jax.random.PRNGKey(0)
    key_x, key_w = jax.random.split(key)

    N, Cin, H, W = 2, 4, 16, 16
    Cout, K = 8, 4

    x = jax.random.normal(key_x, (N, Cin, H, W), jnp.float32)
    # torch ConvTranspose2d weight layout: (in_ch, out_ch, kH, kW)
    weight = jax.random.normal(key_w, (Cin, Cout, K, K), jnp.float32) * 0.1

    # Independent reference: XLA dilated conv == torch ConvTranspose2d semantics.
    # Operands rounded to bf16 (matching the kernel's MXU operand precision);
    # accumulation is f32 at HIGHEST precision.
    xb = x.astype(jnp.bfloat16).astype(jnp.float32)
    wb = weight.astype(jnp.bfloat16).astype(jnp.float32)
    w_oihw = jnp.transpose(wb, (1, 0, 2, 3))[:, :, ::-1, ::-1]
    ref = jax.lax.conv_general_dilated(
        xb, w_oihw, window_strides=(1, 1),
        padding=((K - 1 - 1, K - 1 - 1), (K - 1 - 1, K - 1 - 1)),
        lhs_dilation=(2, 2),
        dimension_numbers=("NCHW", "OIHW", "NCHW"),
        precision=jax.lax.Precision.HIGHEST)
    ref = jnp.where(ref >= 0, ref, 0.1 * ref)

    # Exercise both the spatially-tiled path (2 row tiles, halo windows) and the
    # auto-picked whole-image path.
    for tr in (8, None):
        out = upconv_layer(x, weight, tile_rows=tr)
        out = jax.block_until_ready(out)
        assert out.shape == (N, Cout, 2 * H, 2 * W), out.shape
        max_err = float(jnp.max(jnp.abs(out - ref)))
        assert jnp.allclose(out, ref, atol=1e-3, rtol=1e-3), \
            f"mismatch vs reference (tile_rows={tr}), max err {max_err}"

    print("KERNEL_OK")
</pallas_src>

<mosaic_0001>
module attributes {stable_mosaic.version = 11 : i64} {
  func.func @_upconv_phase_kernel(%arg0: i32, %arg1: i32, %arg2: i32, %arg3: memref<1x10x18x4xbf16, #tpu.memory_space<vmem>>, %arg4: memref<36x128xbf16, #tpu.memory_space<vmem>>, %arg5: memref<1x128x128xf32, #tpu.memory_space<vmem>>, %arg6: memref<128x36xbf16, #tpu.memory_space<vmem>>) attributes {dimension_semantics = [#tpu.dimension_semantics<parallel>, #tpu.dimension_semantics<parallel>, #tpu.dimension_semantics<arbitrary>], iteration_bounds = array<i64: 2, 2, 1>, scalar_prefetch = 0 : i64, scratch_operands = 1 : i64, tpu.core_type = #tpu.core_type<tc>, window_params = [{transform_indices = @transform_0, window_bounds = array<i64: 1, 10, 18, 4>}, {transform_indices = @transform_1, window_bounds = array<i64: 36, 128>}, {transform_indices = @transform_2, window_bounds = array<i64: 1, 128, 128>}]} {
    %c0_i32 = arith.constant 0 : i32
    %0 = arith.cmpi eq, %arg2, %c0_i32 : i32
    %1 = arith.extui %0 : i1 to i32
    %c0_i32_0 = arith.constant 0 : i32
    %2 = arith.cmpi ne, %1, %c0_i32_0 : i32
    scf.if %2 {
      %c0_9 = arith.constant 0 : index
      %c0_10 = arith.constant 0 : index
      %c0_11 = arith.constant 0 : index
      %c0_12 = arith.constant 0 : index
      %14 = vector.load %arg3[%c0_9, %c0_10, %c0_11, %c0_12] : memref<1x10x18x4xbf16, #tpu.memory_space<vmem>>, vector<1x8x16x4xbf16>
      %15 = vector.shape_cast %14 : vector<1x8x16x4xbf16> to vector<8x16x4xbf16>
      %16 = vector.shape_cast %15 : vector<8x16x4xbf16> to vector<128x4xbf16>
      %c0_13 = arith.constant 0 : index
      %c0_14 = arith.constant 0 : index
      %17 = vector.load %arg6[%c0_13, %c0_14] : memref<128x36xbf16, #tpu.memory_space<vmem>>, vector<128x4xbf16>
      tpu.vector_store %arg6[%c0_13, %c0_14], %16 {strides = array<i32>} : memref<128x36xbf16, #tpu.memory_space<vmem>>, vector<128x4xbf16>,
      %c0_15 = arith.constant 0 : index
      %c0_16 = arith.constant 0 : index
      %c1 = arith.constant 1 : index
      %c0_17 = arith.constant 0 : index
      %18 = vector.load %arg3[%c0_15, %c0_16, %c1, %c0_17] : memref<1x10x18x4xbf16, #tpu.memory_space<vmem>>, vector<1x8x16x4xbf16>
      %19 = vector.shape_cast %18 : vector<1x8x16x4xbf16> to vector<8x16x4xbf16>
      %20 = vector.shape_cast %19 : vector<8x16x4xbf16> to vector<128x4xbf16>
      %c0_18 = arith.constant 0 : index
      %c4 = arith.constant 4 : index
      %21 = vector.load %arg6[%c0_18, %c4] : memref<128x36xbf16, #tpu.memory_space<vmem>>, vector<128x4xbf16>
      tpu.vector_store %arg6[%c0_18, %c4], %20 {strides = array<i32>} : memref<128x36xbf16, #tpu.memory_space<vmem>>, vector<128x4xbf16>,
      %c0_19 = arith.constant 0 : index
      %c0_20 = arith.constant 0 : index
      %c2 = arith.constant 2 : index
      %c0_21 = arith.constant 0 : index
      %22 = vector.load %arg3[%c0_19, %c0_20, %c2, %c0_21] : memref<1x10x18x4xbf16, #tpu.memory_space<vmem>>, vector<1x8x16x4xbf16>
      %23 = vector.shape_cast %22 : vector<1x8x16x4xbf16> to vector<8x16x4xbf16>
      %24 = vector.shape_cast %23 : vector<8x16x4xbf16> to vector<128x4xbf16>
      %c0_22 = arith.constant 0 : index
      %c8 = arith.constant 8 : index
      %25 = vector.load %arg6[%c0_22, %c8] : memref<128x36xbf16, #tpu.memory_space<vmem>>, vector<128x4xbf16>
      tpu.vector_store %arg6[%c0_22, %c8], %24 {strides = array<i32>} : memref<128x36xbf16, #tpu.memory_space<vmem>>, vector<128x4xbf16>,
      %c0_23 = arith.constant 0 : index
      %c1_24 = arith.constant 1 : index
      %c0_25 = arith.constant 0 : index
      %c0_26 = arith.constant 0 : index
      %26 = vector.load %arg3[%c0_23, %c1_24, %c0_25, %c0_26] : memref<1x10x18x4xbf16, #tpu.memory_space<vmem>>, vector<1x8x16x4xbf16>
      %27 = vector.shape_cast %26 : vector<1x8x16x4xbf16> to vector<8x16x4xbf16>
      %28 = vector.shape_cast %27 : vector<8x16x4xbf16> to vector<128x4xbf16>
      %c0_27 = arith.constant 0 : index
      %c12 = arith.constant 12 : index
      %29 = vector.load %arg6[%c0_27, %c12] : memref<128x36xbf16, #tpu.memory_space<vmem>>, vector<128x4xbf16>
      tpu.vector_store %arg6[%c0_27, %c12], %28 {strides = array<i32>} : memref<128x36xbf16, #tpu.memory_space<vmem>>, vector<128x4xbf16>,
      %c0_28 = arith.constant 0 : index
      %c1_29 = arith.constant 1 : index
      %c1_30 = arith.constant 1 : index
      %c0_31 = arith.constant 0 : index
      %30 = vector.load %arg3[%c0_28, %c1_29, %c1_30, %c0_31] : memref<1x10x18x4xbf16, #tpu.memory_space<vmem>>, vector<1x8x16x4xbf16>
      %31 = vector.shape_cast %30 : vector<1x8x16x4xbf16> to vector<8x16x4xbf16>
      %32 = vector.shape_cast %31 : vector<8x16x4xbf16> to vector<128x4xbf16>
      %c0_32 = arith.constant 0 : index
      %c16 = arith.constant 16 : index
      %33 = vector.load %arg6[%c0_32, %c16] : memref<128x36xbf16, #tpu.memory_space<vmem>>, vector<128x4xbf16>
      tpu.vector_store %arg6[%c0_32, %c16], %32 {strides = array<i32>} : memref<128x36xbf16, #tpu.memory_space<vmem>>, vector<128x4xbf16>,
      %c0_33 = arith.constant 0 : index
      %c1_34 = arith.constant 1 : index
      %c2_35 = arith.constant 2 : index
      %c0_36 = arith.constant 0 : index
      %34 = vector.load %arg3[%c0_33, %c1_34, %c2_35, %c0_36] : memref<1x10x18x4xbf16, #tpu.memory_space<vmem>>, vector<1x8x16x4xbf16>
      %35 = vector.shape_cast %34 : vector<1x8x16x4xbf16> to vector<8x16x4xbf16>
      %36 = vector.shape_cast %35 : vector<8x16x4xbf16> to vector<128x4xbf16>
      %c0_37 = arith.constant 0 : index
      %c20 = arith.constant 20 : index
      %37 = vector.load %arg6[%c0_37, %c20] : memref<128x36xbf16, #tpu.memory_space<vmem>>, vector<128x4xbf16>
      tpu.vector_store %arg6[%c0_37, %c20], %36 {strides = array<i32>} : memref<128x36xbf16, #tpu.memory_space<vmem>>, vector<128x4xbf16>,
      %c0_38 = arith.constant 0 : index
      %c2_39 = arith.constant 2 : index
      %c0_40 = arith.constant 0 : index
      %c0_41 = arith.constant 0 : index
      %38 = vector.load %arg3[%c0_38, %c2_39, %c0_40, %c0_41] : memref<1x10x18x4xbf16, #tpu.memory_space<vmem>>, vector<1x8x16x4xbf16>
      %39 = vector.shape_cast %38 : vector<1x8x16x4xbf16> to vector<8x16x4xbf16>
      %40 = vector.shape_cast %39 : vector<8x16x4xbf16> to vector<128x4xbf16>
      %c0_42 = arith.constant 0 : index
      %c24 = arith.constant 24 : index
      %41 = vector.load %arg6[%c0_42, %c24] : memref<128x36xbf16, #tpu.memory_space<vmem>>, vector<128x4xbf16>
      tpu.vector_store %arg6[%c0_42, %c24], %40 {strides = array<i32>} : memref<128x36xbf16, #tpu.memory_space<vmem>>, vector<128x4xbf16>,
      %c0_43 = arith.constant 0 : index
      %c2_44 = arith.constant 2 : index
      %c1_45 = arith.constant 1 : index
      %c0_46 = arith.constant 0 : index
      %42 = vector.load %arg3[%c0_43, %c2_44, %c1_45, %c0_46] : memref<1x10x18x4xbf16, #tpu.memory_space<vmem>>, vector<1x8x16x4xbf16>
      %43 = vector.shape_cast %42 : vector<1x8x16x4xbf16> to vector<8x16x4xbf16>
      %44 = vector.shape_cast %43 : vector<8x16x4xbf16> to vector<128x4xbf16>
      %c0_47 = arith.constant 0 : index
      %c28 = arith.constant 28 : index
      %45 = vector.load %arg6[%c0_47, %c28] : memref<128x36xbf16, #tpu.memory_space<vmem>>, vector<128x4xbf16>
      tpu.vector_store %arg6[%c0_47, %c28], %44 {strides = array<i32>} : memref<128x36xbf16, #tpu.memory_space<vmem>>, vector<128x4xbf16>,
      %c0_48 = arith.constant 0 : index
      %c2_49 = arith.constant 2 : index
      %c2_50 = arith.constant 2 : index
      %c0_51 = arith.constant 0 : index
      %46 = vector.load %arg3[%c0_48, %c2_49, %c2_50, %c0_51] : memref<1x10x18x4xbf16, #tpu.memory_space<vmem>>, vector<1x8x16x4xbf16>
      %47 = vector.shape_cast %46 : vector<1x8x16x4xbf16> to vector<8x16x4xbf16>
      %48 = vector.shape_cast %47 : vector<8x16x4xbf16> to vector<128x4xbf16>
      %c0_52 = arith.constant 0 : index
      %c32 = arith.constant 32 : index
      %49 = vector.load %arg6[%c0_52, %c32] : memref<128x36xbf16, #tpu.memory_space<vmem>>, vector<128x4xbf16>
      tpu.vector_store %arg6[%c0_52, %c32], %48 {strides = array<i32>} : memref<128x36xbf16, #tpu.memory_space<vmem>>, vector<128x4xbf16>,
    } else {
    }
    %c0 = arith.constant 0 : index
    %c0_1 = arith.constant 0 : index
    %3 = vector.load %arg6[%c0, %c0_1] : memref<128x36xbf16, #tpu.memory_space<vmem>>, vector<128x36xbf16>
    %c0_2 = arith.constant 0 : index
    %c0_3 = arith.constant 0 : index
    %4 = vector.load %arg4[%c0_2, %c0_3] : memref<36x128xbf16, #tpu.memory_space<vmem>>, vector<36x128xbf16>
    %cst = arith.constant dense<0.000000e+00> : vector<128x128xf32>
    %5 = tpu.matmul %3, %4, %cst {dimension_numbers = #tpu.dot_dimension_numbers<[1], [0], [0], [1], [0, 0, 1, 1], [], []>} : vector<128x36xbf16>, vector<36x128xbf16>, vector<128x128xf32> -> vector<128x128xf32>
    %cst_4 = arith.constant 0.000000e+00 : f32
    %6 = vector.broadcast %cst_4 : f32 to vector<128x128xf32>
    %7 = arith.cmpf oge, %5, %6 : vector<128x128xf32>
    %cst_5 = arith.constant 1.000000e-01 : f32
    %8 = vector.broadcast %cst_5 : f32 to vector<128x128xf32>
    %9 = arith.mulf %8, %5 : vector<128x128xf32>
    %10 = arith.select %7, %5, %9 : vector<128x128xi1>, vector<128x128xf32>
    %c0_6 = arith.constant 0 : index
    %c0_7 = arith.constant 0 : index
    %c0_8 = arith.constant 0 : index
    %11 = vector.load %arg5[%c0_6, %c0_7, %c0_8] : memref<1x128x128xf32, #tpu.memory_space<vmem>>, vector<1x128x128xf32>
    %12 = vector.shape_cast %11 : vector<1x128x128xf32> to vector<128x128xf32>
    %13 = vector.shape_cast %10 : vector<128x128xf32> to vector<1x128x128xf32>
    tpu.vector_store %arg5[%c0_6, %c0_7, %c0_8], %13 {strides = array<i32>} : memref<1x128x128xf32, #tpu.memory_space<vmem>>, vector<1x128x128xf32>,
    return
  }
  func.func @transform_0(%arg0: i32, %arg1: i32, %arg2: i32) -> (i32, i32, i32, i32) {
    %c2_i32 = arith.constant 2 : i32
    %0 = arith.muli %arg0, %c2_i32 : i32
    %1 = arith.addi %0, %arg1 : i32
    %c0_i32 = arith.constant 0 : i32
    %c0_i32_0 = arith.constant 0 : i32
    %c0_i32_1 = arith.constant 0 : i32
    %c0_i32_2 = arith.constant 0 : i32
    return %1, %c0_i32, %c0_i32_0, %c0_i32_1 : i32, i32, i32, i32
  }
  func.func @transform_1(%arg0: i32, %arg1: i32, %arg2: i32) -> (i32, i32) {
    %c0_i32 = arith.constant 0 : i32
    %c0_i32_0 = arith.constant 0 : i32
    return %c0_i32, %arg2 : i32, i32
  }
  func.func @transform_2(%arg0: i32, %arg1: i32, %arg2: i32) -> (i32, i32, i32) {
    %c0_i32 = arith.constant 0 : i32
    return %arg0, %arg1, %arg2 : i32, i32, i32
  }
}

</mosaic_0001>

<llo_original>
// kernel: tpu_custom_call.1
$region0: #{tpu_custom_call.1}
  #allocation0 [shape = 'u32[]', space=smem, size = 0x4, offset = 0x4, fixed_abs, tag = 'smem constant byte address 0x4 - core index']
  #allocation1 [shape = 'u32[144,128]{1,0:T(1,128)}', space=vmem, size = 0x12000, scoped, tag = 'internal scratch']
  #allocation2 [shape = 'bf16[128,36]{1,0:T(16,128)(2,1)}', space=vmem, size = 0x8000, scoped, tag = 'scratch operand']
  %s0 = inlined_call_operand.vmem [shape: bf16[4,10,18,4], index: 0, kind: input, shape index: {}]
  %s1 = inlined_call_operand.vmem [shape: bf16[36,128], index: 1, kind: input, shape index: {}]
  %s2 = inlined_call_operand.hbm [shape: f32[2,256,128], index: 2, kind: output, shape index: {}]
  %s3 = sld [smem:[#allocation0]]
  $region45: #{tpu_custom_call.1} parent=0
    _
  %s5 = ssub.s32 1, %s3
  %s6 = scalar_select 0, %s5, %s3
  $region1: #{tpu_custom_call.1} parent=0
    #allocation3 [shape = 'u8[131072]{0}', space=vmem, size = 0x20000, scoped, tag = 'output window, operand 0']
    #allocation4 [shape = 's32[2]{0}', space=sflag, size = 0x8, scoped, tag = 'scoped memory for tpu_custom_call.1']
    %7 = vsyncpa [#allocation4], 0
    %s8 = scalar_lea.sflag [#allocation4], 1
    %9 = vsyncpa %s8, 0
    loop: start=0, step=1, limit=6
    $region2: #{tpu_custom_call.1} parent=1 // loop_pre_header
      _
    $region3: #{tpu_custom_call.1} parent=1 // loop_header
      %s11 = sphi 0, %s15
      %p12 = scmp.ge.s32.totalorder %s11, 6
      %s18 = sphi 0, %s37
      %s19 = sphi 0, %s33
      %s20 = sphi 0, %s29
      %s21 = sphi 0, %s18
      %s22 = sphi 0, %s19
      %s23 = sphi 0, %s20
      %s24 = sphi 0, %s21
      %s25 = sphi 0, %s22
      %s26 = sphi 0, %s23
      %s44 = sphi 0, %s46
      %s47 = sphi 0, %s44
      %s48 = sphi 0, %s47
      %s64 = sphi 0, %s48
      %s70 = sphi 0, %s72
      %s73 = sphi 0, %s70
      %s74 = sphi 0, %s73
      %s90 = sphi 0, %s74
      %s100 = sphi 0, %s102
      %s103 = sphi 0, %s100
      %s104 = sphi 0, %s103
      %s120 = sphi 0, %s104
    $region4: #{tpu_custom_call.1} parent=1 // loop_header_branch
      %14 = sbr.rel (%p12) target = $region8
    $region5: #{tpu_custom_call.1} parent=1 // loop_body
      %s16 = ssub.s32 %s11, 1
      %s17 = ssub.s32 %s11, 2
      %s27 = sadd.s32 1, %s20
      %p28 = scmp.ge.s32.totalorder %s27, 1
      %s29 = scalar_select %p28, 0, %s27
      %s30 = sadd.s32 1, %s19
      %s31 = scalar_select %p28, %s30, %s19
      %p32 = scmp.ge.s32.totalorder %s31, 2
      %s33 = scalar_select %p32, 0, %s31
      %s34 = sadd.s32 1, %s18
      %s35 = scalar_select %p32, %s34, %s18
      %p36 = scmp.ge.s32.totalorder %s35, 2
      %s37 = scalar_select %p36, 0, %s35
      %s38 = smul.u32 %s18, 2
      %s39 = sadd.s32 %s38, %s19
      %s40 = smul.u32 %s37, 2
      %s41 = sadd.s32 %s40, %s33
      %s42 = ssub.s32 %s39, %s41
      %p43 = scmp.eq.s32.totalorder %s42, 0
      %s45 = sadd.s32 %s44, 1
      %s46 = scalar_select %p43, %s44, %s45
      %p49 = pneg %p43
      %p50 = scmp.eq.s32.totalorder %s11, 3
      %p51 = por %p49, %p50
      %p52 = scmp.ne.s32.totalorder %s44, %s47
      %p53 = scmp.eq.s32.totalorder %s11, 0
      %p54 = por %p52, %p53
      %p55 = scmp.ne.s32.totalorder %s44, %s47
      %p56 = scmp.eq.s32.totalorder %s16, 3
      %p57 = por %p55, %p56
      %p58 = scmp.ne.s32.totalorder %s47, %s48
      %p59 = scmp.eq.s32.totalorder %s16, 0
      %p60 = por %p58, %p59
      %p61 = scmp.ne.s32.totalorder %s47, %s48
      %p62 = scmp.eq.s32.totalorder %s17, 3
      %p63 = por %p61, %p62
      %p65 = scmp.ne.s32.totalorder %s48, %s64
      %p66 = scmp.eq.s32.totalorder %s17, 0
      %p67 = por %p65, %p66
      %s68 = ssub.s32 %s20, %s29
      %p69 = scmp.eq.s32.totalorder %s68, 0
      %s71 = sadd.s32 %s70, 1
      %s72 = scalar_select %p69, %s70, %s71
      %p75 = pneg %p69
      %p76 = scmp.eq.s32.totalorder %s11, 3
      %p77 = por %p75, %p76
      %p78 = scmp.ne.s32.totalorder %s70, %s73
      %p79 = scmp.eq.s32.totalorder %s11, 0
      %p80 = por %p78, %p79
      %p81 = scmp.ne.s32.totalorder %s70, %s73
      %p82 = scmp.eq.s32.totalorder %s16, 3
      %p83 = por %p81, %p82
      %p84 = scmp.ne.s32.totalorder %s73, %s74
      %p85 = scmp.eq.s32.totalorder %s16, 0
      %p86 = por %p84, %p85
      %p87 = scmp.ne.s32.totalorder %s73, %s74
      %p88 = scmp.eq.s32.totalorder %s17, 3
      %p89 = por %p87, %p88
      %p91 = scmp.ne.s32.totalorder %s74, %s90
      %p92 = scmp.eq.s32.totalorder %s17, 0
      %p93 = por %p91, %p92
      %s94 = ssub.s32 %s18, %s37
      %s95 = ssub.s32 %s19, %s33
      %s96 = sor.u32 %s94, %s95
      %s97 = ssub.s32 %s20, %s29
      %s98 = sor.u32 %s96, %s97
      %p99 = scmp.eq.s32.totalorder %s98, 0
      %s101 = sadd.s32 %s100, 1
      %s102 = scalar_select %p99, %s100, %s101
      %p105 = pneg %p99
      %p106 = scmp.eq.s32.totalorder %s11, 3
      %p107 = por %p105, %p106
      %p108 = scmp.ne.s32.totalorder %s100, %s103
      %p109 = scmp.eq.s32.totalorder %s11, 0
      %p110 = por %p108, %p109
      %p111 = scmp.ne.s32.totalorder %s100, %s103
      %p112 = scmp.eq.s32.totalorder %s16, 3
      %p113 = por %p111, %p112
      %p114 = scmp.ne.s32.totalorder %s103, %s104
      %p115 = scmp.eq.s32.totalorder %s16, 0
      %p116 = por %p114, %p115
      %p117 = scmp.ne.s32.totalorder %s103, %s104
      %p118 = scmp.eq.s32.totalorder %s17, 3
      %p119 = por %p117, %p118
      %p121 = scmp.ne.s32.totalorder %s104, %s120
      %p122 = scmp.eq.s32.totalorder %s17, 0
      %p123 = por %p121, %p122
      %p124 = scmp.le.s32.totalorder 1, %s11
      %p125 = scmp.lt.s32.totalorder %s11, 5
      %p126 = pnand %p124, %p125
      %p127 = pneg %p126
      // Predicated region
      $region9: #{tpu_custom_call.1} parent=5 // pred_check
        _
      $region10: #{tpu_custom_call.1} parent=5 // pred_check_branch
        %129 = sbr.rel (%p126) target = $region12
      $region11: #{tpu_custom_call.1} parent=5 // pred_region
        %s130 = ssub.s32 %s11, 1
        // Predicated region
        $region13: #{tpu_custom_call.1} parent=11 // pred_check
          %p131 = pneg %p86
        $region14: #{tpu_custom_call.1} parent=11 // pred_check_branch
          %133 = sbr.rel (%p131) target = $region16
        $region15: #{tpu_custom_call.1} parent=11 // pred_region
          %p134 = scmp.lt.s32.totalorder %s23, 0
          %s135 = scalar_select %p134, %s23, 0
          %s136 = smul.addr %s135, 4
          %s137 = scalar_lea.vmem %s1, %s136
        $region16: #{tpu_custom_call.1} parent=11 // pred_fallthru
          _
      $region12: #{tpu_custom_call.1} parent=5 // pred_fallthru
        _
      %p138 = scmp.lt.s32.totalorder %s11, 4
      // Predicated region
      $region17: #{tpu_custom_call.1} parent=5 // pred_check
        %p139 = pneg %p138
      $region18: #{tpu_custom_call.1} parent=5 // pred_check_branch
        %141 = sbr.rel (%p139) target = $region20
      $region19: #{tpu_custom_call.1} parent=5 // pred_region
        // Predicated region
        $region21: #{tpu_custom_call.1} parent=19 // pred_check
          %p142 = pneg %p54
        $region22: #{tpu_custom_call.1} parent=19 // pred_check_branch
          %144 = sbr.rel (%p142) target = $region24
        $region23: #{tpu_custom_call.1} parent=19 // pred_region
          %s145 = smul.u32 %s18, 2
          %s146 = sadd.s32 %s145, %s19
          %p147 = scmp.lt.s32.totalorder %s146, 3
          %s148 = scalar_select %p147, %s146, 3
          %s149 = smul.addr %s148, 30
          %s150 = smul.addr %s149, 4
          %s151 = scalar_lea.vmem %s0, %s150
          %s152 = smul.u32 %s18, 2
          %s153 = sadd.s32 %s152, %s19
        $region24: #{tpu_custom_call.1} parent=19 // pred_fallthru
          _
      $region20: #{tpu_custom_call.1} parent=5 // pred_fallthru
        _
      %p154 = scmp.le.s32.totalorder 1, %s11
      %p155 = scmp.lt.s32.totalorder %s11, 5
      %p156 = pnand %p154, %p155
      %p157 = pneg %p156
      // Predicated region
      $region25: #{tpu_custom_call.1} parent=5 // pred_check
        _
      $region26: #{tpu_custom_call.1} parent=5 // pred_check_branch
        %159 = sbr.rel (%p156) target = $region28
      $region27: #{tpu_custom_call.1} parent=5 // pred_region
        %s160 = ssub.s32 %s11, 1
        %s161 = smul.u32 %s21, 2
        %s162 = sadd.s32 %s161, %s22
        %p163 = scmp.lt.s32.totalorder %s162, 3
        %s164 = scalar_select %p163, %s162, 3
        %s165 = smul.addr %s164, 30
        %s166 = smul.addr %s165, 4
        %s167 = scalar_lea.vmem %s0, %s166
        %p168 = pneg %p60
        %p169 = pneg %p57
        %p170 = scmp.lt.s32.totalorder %s23, 0
        %s171 = scalar_select %p170, %s23, 0
        %s172 = smul.addr %s171, 4
        %s173 = scalar_lea.vmem %s1, %s172
        %p174 = pneg %p86
        %p175 = pneg %p83
        %p176 = pneg %p116
        %p177 = pneg %p113
        %s178 = sand.u32 %s103, 1
        %s179 = scalar_lea.sflag [#allocation4], %s178
        %s180 = sand.u32 %s103, 1
        %s181 = smul.addr %s180, 128
        %s182 = scalar_lea.vmem [#allocation3], %s181
        %s183 = smul.u32 %s21, 2
        %s184 = sadd.s32 %s183, %s22
        %p185 = scmp.lt.s32.totalorder %s184, 3
        %s186 = scalar_select %p185, %s184, 3
        %s187 = smul.addr %s186, 30
        %s188 = smul.addr %s187, 4
        %s189 = scalar_lea.vmem %s0, %s188
        %s190 = smul.u32 %s21, 2
        %s191 = sadd.s32 %s190, %s22
        %p192 = scmp.lt.s32.totalorder %s23, 0
        %s193 = scalar_select %p192, %s23, 0
        %s194 = smul.addr %s193, 4
        %s195 = scalar_lea.vmem %s1, %s194
        %s196 = smul.u32 16, %s22
        %p198 = scmp.eq.s32.totalorder %s23, 0
        // Predicated region
        $region29: #{tpu_custom_call.1} parent=27 // pred_check
          %p199 = pneg %p198
        $region30: #{tpu_custom_call.1} parent=27 // pred_check_branch
          %201 = sbr.rel (%p199) target = $region32
        $region31: #{tpu_custom_call.1} parent=27 // pred_region
          %v202 = vld [vmem:[%s189] sm:$0xf]
          %v203 = vld [vmem:[%s189 + $0x4] sm:$0xf]
          %v204 = vld [vmem:[%s189 + $0xc] sm:$0xf]
          %v205 = vld [vmem:[%s189 + $0x10] sm:$0xf]
          %v206 = vld [vmem:[%s189 + $0x18] sm:$0xf]
          %v207 = vld [vmem:[%s189 + $0x1c] sm:$0xf]
          %v208 = vld [vmem:[%s189 + $0x24] sm:$0xf]
          %v209 = vld [vmem:[%s189 + $0x28] sm:$0xf]
          %v210 = vld [vmem:[%s189 + $0x30] sm:$0xf]
          %v211 = vld [vmem:[%s189 + $0x34] sm:$0xf]
          %v212 = vld [vmem:[%s189 + $0x3c] sm:$0xf]
          %v213 = vld [vmem:[%s189 + $0x40] sm:$0xf]
          %v214 = vld [vmem:[%s189 + $0x48] sm:$0xf]
          %v215 = vld [vmem:[%s189 + $0x4c] sm:$0xf]
          %v216 = vld [vmem:[%s189 + $0x54] sm:$0xf]
          %v217 = vld [vmem:[%s189 + $0x58] sm:$0xf]
          %v234 = vunpack.c.l.b16 %v202
          %v235 = vunpack.c.l.b16 %v203
          %v236 = vunpack.c.l.b16 %v204
          %v237 = vunpack.c.l.b16 %v205
          %v238 = vunpack.c.l.b16 %v206
          %v239 = vunpack.c.l.b16 %v207
          %v240 = vunpack.c.l.b16 %v208
          %v241 = vunpack.c.l.b16 %v209
          %v242 = vunpack.c.l.b16 %v210
          %v243 = vunpack.c.l.b16 %v211
          %v244 = vunpack.c.l.b16 %v212
          %v245 = vunpack.c.l.b16 %v213
          %v246 = vunpack.c.l.b16 %v214
          %v247 = vunpack.c.l.b16 %v215
          %v248 = vunpack.c.l.b16 %v216
          %v249 = vunpack.c.l.b16 %v217
          %v250 = vpack.c.b16 %v235, %v234
          %v251 = vpack.c.b16 %v237, %v236
          %v252 = vpack.c.b16 %v239, %v238
          %v253 = vpack.c.b16 %v241, %v240
          %v254 = vpack.c.b16 %v243, %v242
          %v255 = vpack.c.b16 %v245, %v244
          %v256 = vpack.c.b16 %v247, %v246
          %v257 = vpack.c.b16 %v249, %v248
          %vm266 = vcmask 31744
          %267 = vst.msk [vmem:[#allocation2] sm:$0xff] %vm266, %v250
          %268 = vst.msk [vmem:[#allocation2 + $0x8] sm:$0xff] %vm266, %v251
          %269 = vst.msk [vmem:[#allocation2 + $0x10] sm:$0xff] %vm266, %v252
          %270 = vst.msk [vmem:[#allocation2 + $0x18] sm:$0xff] %vm266, %v253
          %271 = vst.msk [vmem:[#allocation2 + $0x20] sm:$0xff] %vm266, %v254
          %272 = vst.msk [vmem:[#allocation2 + $0x28] sm:$0xff] %vm266, %v255
          %273 = vst.msk [vmem:[#allocation2 + $0x30] sm:$0xff] %vm266, %v256
          %274 = vst.msk [vmem:[#allocation2 + $0x38] sm:$0xff] %vm266, %v257
          %v275 = vld [vmem:[%s189] sm:$0xf]
          %v276 = vld [vmem:[%s189 + $0x4] sm:$0xf]
          %v277 = vld [vmem:[%s189 + $0x8] sm:$0x1]
          %v278 = vld [vmem:[%s189 + $0xc] sm:$0xf]
          %v279 = vld [vmem:[%s189 + $0x10] sm:$0xf]
          %v280 = vld [vmem:[%s189 + $0x14] sm:$0x1]
          %v281 = vld [vmem:[%s189 + $0x18] sm:$0xf]
          %v282 = vld [vmem:[%s189 + $0x1c] sm:$0xf]
          %v283 = vld [vmem:[%s189 + $0x20] sm:$0x1]
          %v284 = vld [vmem:[%s189 + $0x24] sm:$0xf]
          %v285 = vld [vmem:[%s189 + $0x28] sm:$0xf]
          %v286 = vld [vmem:[%s189 + $0x2c] sm:$0x1]
          %v287 = vld [vmem:[%s189 + $0x30] sm:$0xf]
          %v288 = vld [vmem:[%s189 + $0x34] sm:$0xf]
          %v289 = vld [vmem:[%s189 + $0x38] sm:$0x1]
          %v290 = vld [vmem:[%s189 + $0x3c] sm:$0xf]
          %v291 = vld [vmem:[%s189 + $0x40] sm:$0xf]
          %v292 = vld [vmem:[%s189 + $0x44] sm:$0x1]
          %v293 = vld [vmem:[%s189 + $0x48] sm:$0xf]
          %v294 = vld [vmem:[%s189 + $0x4c] sm:$0xf]
          %v295 = vld [vmem:[%s189 + $0x50] sm:$0x1]
          %v296 = vld [vmem:[%s189 + $0x54] sm:$0xf]
          %v297 = vld [vmem:[%s189 + $0x58] sm:$0xf]
          %v298 = vld [vmem:[%s189 + $0x5c] sm:$0x1]
          %vm299 = vsmask.f32 3328
          %vm300 = vsmask.f32 7440
          %vm301 = vmor %vm299, %vm300
          %v303 = vshrl.u32 %v275, 16
          %v305 = vrot.slane %v303, 4
          %v306 = vshll.u32 %v275, 16
          %v308 = vrot.slane %v306, 5
          %v309 = vor.u32 %v305, %v308
          %v310 = vrot.slane %v309, 4
          %v312 = vshll.u32 %v276, 16
          %v314 = vrot.slane %v312, 5
          %v315 = vsel %vm301, %v310, %v314
          %v316 = vshrl.u32 %v276, 16
          %v318 = vrot.slane %v316, 4
          %v319 = vor.u32 %v318, %v314
          %v320 = vrot.slane %v319, 4
          %v322 = vshll.u32 %v277, 16
          %v324 = vrot.slane %v322, 5
          %v325 = vsel %vm301, %v320, %v324
          %v327 = vshrl.u32 %v278, 16
          %v329 = vrot.slane %v327, 4
          %v330 = vshll.u32 %v278, 16
          %v332 = vrot.slane %v330, 5
          %v333 = vor.u32 %v329, %v332
          %v334 = vrot.slane %v333, 4
          %v336 = vshll.u32 %v279, 16
          %v338 = vrot.slane %v336, 5
          %v339 = vsel %vm301, %v334, %v338
          %v340 = vshrl.u32 %v279, 16
          %v342 = vrot.slane %v340, 4
          %v343 = vor.u32 %v342, %v338
          %v344 = vrot.slane %v343, 4
          %v346 = vshll.u32 %v280, 16
          %v348 = vrot.slane %v346, 5
          %v349 = vsel %vm301, %v344, %v348
          %v351 = vshrl.u32 %v281, 16
          %v353 = vrot.slane %v351, 4
          %v354 = vshll.u32 %v281, 16
          %v356 = vrot.slane %v354, 5
          %v357 = vor.u32 %v353, %v356
          %v358 = vrot.slane %v357, 4
          %v360 = vshll.u32 %v282, 16
          %v362 = vrot.slane %v360, 5
          %v363 = vsel %vm301, %v358, %v362
          %v364 = vshrl.u32 %v282, 16
          %v366 = vrot.slane %v364, 4
          %v367 = vor.u32 %v366, %v362
          %v368 = vrot.slane %v367, 4
          %v370 = vshll.u32 %v283, 16
          %v372 = vrot.slane %v370, 5
          %v373 = vsel %vm301, %v368, %v372
          %v375 = vshrl.u32 %v284, 16
          %v377 = vrot.slane %v375, 4
          %v378 = vshll.u32 %v284, 16
          %v380 = vrot.slane %v378, 5
          %v381 = vor.u32 %v377, %v380
          %v382 = vrot.slane %v381, 4
          %v384 = vshll.u32 %v285, 16
          %v386 = vrot.slane %v384, 5
          %v387 = vsel %vm301, %v382, %v386
          %v388 = vshrl.u32 %v285, 16
          %v390 = vrot.slane %v388, 4
          %v391 = vor.u32 %v390, %v386
          %v392 = vrot.slane %v391, 4
          %v394 = vshll.u32 %v286, 16
          %v396 = vrot.slane %v394, 5
          %v397 = vsel %vm301, %v392, %v396
          %v399 = vshrl.u32 %v287, 16
          %v401 = vrot.slane %v399, 4
          %v402 = vshll.u32 %v287, 16
          %v404 = vrot.slane %v402, 5
          %v405 = vor.u32 %v401, %v404
          %v406 = vrot.slane %v405, 4
          %v408 = vshll.u32 %v288, 16
          %v410 = vrot.slane %v408, 5
          %v411 = vsel %vm301, %v406, %v410
          %v412 = vshrl.u32 %v288, 16
          %v414 = vrot.slane %v412, 4
          %v415 = vor.u32 %v414, %v410
          %v416 = vrot.slane %v415, 4
          %v418 = vshll.u32 %v289, 16
          %v420 = vrot.slane %v418, 5
          %v421 = vsel %vm301, %v416, %v420
          %v423 = vshrl.u32 %v290, 16
          %v425 = vrot.slane %v423, 4
          %v426 = vshll.u32 %v290, 16
          %v428 = vrot.slane %v426, 5
          %v429 = vor.u32 %v425, %v428
          %v430 = vrot.slane %v429, 4
          %v432 = vshll.u32 %v291, 16
          %v434 = vrot.slane %v432, 5
          %v435 = vsel %vm301, %v430, %v434
          %v436 = vshrl.u32 %v291, 16
          %v438 = vrot.slane %v436, 4
          %v439 = vor.u32 %v438, %v434
          %v440 = vrot.slane %v439, 4
          %v442 = vshll.u32 %v292, 16
          %v444 = vrot.slane %v442, 5
          %v445 = vsel %vm301, %v440, %v444
          %v447 = vshrl.u32 %v293, 16
          %v449 = vrot.slane %v447, 4
          %v450 = vshll.u32 %v293, 16
          %v452 = vrot.slane %v450, 5
          %v453 = vor.u32 %v449, %v452
          %v454 = vrot.slane %v453, 4
          %v456 = vshll.u32 %v294, 16
          %v458 = vrot.slane %v456, 5
          %v459 = vsel %vm301, %v454, %v458
          %v460 = vshrl.u32 %v294, 16
          %v462 = vrot.slane %v460, 4
          %v463 = vor.u32 %v462, %v458
          %v464 = vrot.slane %v463, 4
          %v466 = vshll.u32 %v295, 16
          %v468 = vrot.slane %v466, 5
          %v469 = vsel %vm301, %v464, %v468
          %v471 = vshrl.u32 %v296, 16
          %v473 = vrot.slane %v471, 4
          %v474 = vshll.u32 %v296, 16
          %v476 = vrot.slane %v474, 5
          %v477 = vor.u32 %v473, %v476
          %v478 = vrot.slane %v477, 4
          %v480 = vshll.u32 %v297, 16
          %v482 = vrot.slane %v480, 5
          %v483 = vsel %vm301, %v478, %v482
          %v484 = vshrl.u32 %v297, 16
          %v486 = vrot.slane %v484, 4
          %v487 = vor.u32 %v486, %v482
          %v488 = vrot.slane %v487, 4
          %v490 = vshll.u32 %v298, 16
          %v492 = vrot.slane %v490, 5
          %v493 = vsel %vm301, %v488, %v492
          %v494 = vunpack.c.l.b16 %v315
          %v495 = vunpack.c.l.b16 %v325
          %v496 = vunpack.c.l.b16 %v339
          %v497 = vunpack.c.l.b16 %v349
          %v498 = vunpack.c.l.b16 %v363
          %v499 = vunpack.c.l.b16 %v373
          %v500 = vunpack.c.l.b16 %v387
          %v501 = vunpack.c.l.b16 %v397
          %v502 = vunpack.c.l.b16 %v411
          %v503 = vunpack.c.l.b16 %v421
          %v504 = vunpack.c.l.b16 %v435
          %v505 = vunpack.c.l.b16 %v445
          %v506 = vunpack.c.l.b16 %v459
          %v507 = vunpack.c.l.b16 %v469
          %v508 = vunpack.c.l.b16 %v483
          %v509 = vunpack.c.l.b16 %v493
          %v510 = vpack.c.b16 %v495, %v494
          %v511 = vpack.c.b16 %v497, %v496
          %v512 = vpack.c.b16 %v499, %v498
          %v513 = vpack.c.b16 %v501, %v500
          %v514 = vpack.c.b16 %v503, %v502
          %v515 = vpack.c.b16 %v505, %v504
          %v516 = vpack.c.b16 %v507, %v506
          %v517 = vpack.c.b16 %v509, %v508
          %518 = vrot.lane.b32.xlu0 %v510, 4
          %v519 = vpop.permute.xlu0 %518
          %520 = vrot.lane.b32.xlu0 %v511, 4
          %v521 = vpop.permute.xlu0 %520
          %522 = vrot.lane.b32.xlu0 %v512, 4
          %v523 = vpop.permute.xlu0 %522
          %524 = vrot.lane.b32.xlu0 %v513, 4
          %v525 = vpop.permute.xlu0 %524
          %526 = vrot.lane.b32.xlu0 %v514, 4
          %v527 = vpop.permute.xlu0 %526
          %528 = vrot.lane.b32.xlu0 %v515, 4
          %v529 = vpop.permute.xlu0 %528
          %530 = vrot.lane.b32.xlu0 %v516, 4
          %v531 = vpop.permute.xlu0 %530
          %532 = vrot.lane.b32.xlu0 %v517, 4
          %v533 = vpop.permute.xlu0 %532
          %vm542 = vcmask 64544
          %543 = vst.msk [vmem:[#allocation2] sm:$0xff] %vm542, %v519
          %544 = vst.msk [vmem:[#allocation2 + $0x8] sm:$0xff] %vm542, %v521
          %545 = vst.msk [vmem:[#allocation2 + $0x10] sm:$0xff] %vm542, %v523
          %546 = vst.msk [vmem:[#allocation2 + $0x18] sm:$0xff] %vm542, %v525
          %547 = vst.msk [vmem:[#allocation2 + $0x20] sm:$0xff] %vm542, %v527
          %548 = vst.msk [vmem:[#allocation2 + $0x28] sm:$0xff] %vm542, %v529
          %549 = vst.msk [vmem:[#allocation2 + $0x30] sm:$0xff] %vm542, %v531
          %550 = vst.msk [vmem:[#allocation2 + $0x38] sm:$0xff] %vm542, %v533
          %v551 = vld [vmem:[%s189] sm:$0xe]
          %v552 = vld [vmem:[%s189 + $0x4] sm:$0xf]
          %v553 = vld [vmem:[%s189 + $0x8] sm:$0x1]
          %v554 = vld [vmem:[%s189 + $0xc] sm:$0xe]
          %v555 = vld [vmem:[%s189 + $0x10] sm:$0xf]
          %v556 = vld [vmem:[%s189 + $0x14] sm:$0x1]
          %v557 = vld [vmem:[%s189 + $0x18] sm:$0xe]
          %v558 = vld [vmem:[%s189 + $0x1c] sm:$0xf]
          %v559 = vld [vmem:[%s189 + $0x20] sm:$0x1]
          %v560 = vld [vmem:[%s189 + $0x24] sm:$0xe]
          %v561 = vld [vmem:[%s189 + $0x28] sm:$0xf]
          %v562 = vld [vmem:[%s189 + $0x2c] sm:$0x1]
          %v563 = vld [vmem:[%s189 + $0x30] sm:$0xe]
          %v564 = vld [vmem:[%s189 + $0x34] sm:$0xf]
          %v565 = vld [vmem:[%s189 + $0x38] sm:$0x1]
          %v566 = vld [vmem:[%s189 + $0x3c] sm:$0xe]
          %v567 = vld [vmem:[%s189 + $0x40] sm:$0xf]
          %v568 = vld [vmem:[%s189 + $0x44] sm:$0x1]
          %v569 = vld [vmem:[%s189 + $0x48] sm:$0xe]
          %v570 = vld [vmem:[%s189 + $0x4c] sm:$0xf]
          %v571 = vld [vmem:[%s189 + $0x50] sm:$0x1]
          %v572 = vld [vmem:[%s189 + $0x54] sm:$0xe]
          %v573 = vld [vmem:[%s189 + $0x58] sm:$0xf]
          %v574 = vld [vmem:[%s189 + $0x5c] sm:$0x1]
          %vm599 = vcmask 1042432
          %vm600 = vcmask 1046532
          %vm601 = vmor %vm599, %vm600
          %v602 = vrot.slane %v551, 5
          %v603 = vrot.slane %v602, 4
          %v604 = vrot.slane %v552, 5
          %v605 = vsel %vm601, %v603, %v604
          %v606 = vrot.slane %v604, 4
          %v607 = vrot.slane %v553, 5
          %v608 = vsel %vm601, %v606, %v607
          %v609 = vrot.slane %v554, 5
          %v610 = vrot.slane %v609, 4
          %v611 = vrot.slane %v555, 5
          %v612 = vsel %vm601, %v610, %v611
          %v613 = vrot.slane %v611, 4
          %v614 = vrot.slane %v556, 5
          %v615 = vsel %vm601, %v613, %v614
          %v616 = vrot.slane %v557, 5
          %v617 = vrot.slane %v616, 4
          %v618 = vrot.slane %v558, 5
          %v619 = vsel %vm601, %v617, %v618
          %v620 = vrot.slane %v618, 4
          %v621 = vrot.slane %v559, 5
          %v622 = vsel %vm601, %v620, %v621
          %v623 = vrot.slane %v560, 5
          %v624 = vrot.slane %v623, 4
          %v625 = vrot.slane %v561, 5
          %v626 = vsel %vm601, %v624, %v625
          %v627 = vrot.slane %v625, 4
          %v628 = vrot.slane %v562, 5
          %v629 = vsel %vm601, %v627, %v628
          %v630 = vrot.slane %v563, 5
          %v631 = vrot.slane %v630, 4
          %v632 = vrot.slane %v564, 5
          %v633 = vsel %vm601, %v631, %v632
          %v634 = vrot.slane %v632, 4
          %v635 = vrot.slane %v565, 5
          %v636 = vsel %vm601, %v634, %v635
          %v637 = vrot.slane %v566, 5
          %v638 = vrot.slane %v637, 4
          %v639 = vrot.slane %v567, 5
          %v640 = vsel %vm601, %v638, %v639
          %v641 = vrot.slane %v639, 4
          %v642 = vrot.slane %v568, 5
          %v643 = vsel %vm601, %v641, %v642
          %v644 = vrot.slane %v569, 5
          %v645 = vrot.slane %v644, 4
          %v646 = vrot.slane %v570, 5
          %v647 = vsel %vm601, %v645, %v646
          %v648 = vrot.slane %v646, 4
          %v649 = vrot.slane %v571, 5
          %v650 = vsel %vm601, %v648, %v649
          %v651 = vrot.slane %v572, 5
          %v652 = vrot.slane %v651, 4
          %v653 = vrot.slane %v573, 5
          %v654 = vsel %vm601, %v652, %v653
          %v655 = vrot.slane %v653, 4
          %v656 = vrot.slane %v574, 5
          %v657 = vsel %vm601, %v655, %v656
          %v658 = vunpack.c.l.b16 %v605
          %v659 = vunpack.c.l.b16 %v608
          %v660 = vunpack.c.l.b16 %v612
          %v661 = vunpack.c.l.b16 %v615
          %v662 = vunpack.c.l.b16 %v619
          %v663 = vunpack.c.l.b16 %v622
          %v664 = vunpack.c.l.b16 %v626
          %v665 = vunpack.c.l.b16 %v629
          %v666 = vunpack.c.l.b16 %v633
          %v667 = vunpack.c.l.b16 %v636
          %v668 = vunpack.c.l.b16 %v640
          %v669 = vunpack.c.l.b16 %v643
          %v670 = vunpack.c.l.b16 %v647
          %v671 = vunpack.c.l.b16 %v650
          %v672 = vunpack.c.l.b16 %v654
          %v673 = vunpack.c.l.b16 %v657
          %v674 = vpack.c.b16 %v659, %v658
          %v675 = vpack.c.b16 %v661, %v660
          %v676 = vpack.c.b16 %v663, %v662
          %v677 = vpack.c.b16 %v665, %v664
          %v678 = vpack.c.b16 %v667, %v666
          %v679 = vpack.c.b16 %v669, %v668
          %v680 = vpack.c.b16 %v671, %v670
          %v681 = vpack.c.b16 %v673, %v672
          %682 = vrot.lane.b32.xlu0 %v674, 8
          %v683 = vpop.permute.xlu0 %682
          %684 = vrot.lane.b32.xlu0 %v675, 8
          %v685 = vpop.permute.xlu0 %684
          %686 = vrot.lane.b32.xlu0 %v676, 8
          %v687 = vpop.permute.xlu0 %686
          %688 = vrot.lane.b32.xlu0 %v677, 8
          %v689 = vpop.permute.xlu0 %688
          %690 = vrot.lane.b32.xlu0 %v678, 8
          %v691 = vpop.permute.xlu0 %690
          %692 = vrot.lane.b32.xlu0 %v679, 8
          %v693 = vpop.permute.xlu0 %692
          %694 = vrot.lane.b32.xlu0 %v680, 8
          %v695 = vpop.permute.xlu0 %694
          %696 = vrot.lane.b32.xlu0 %v681, 8
          %v697 = vpop.permute.xlu0 %696
          %vm706 = vcmask 97344
          %707 = vst.msk [vmem:[#allocation2] sm:$0xff] %vm706, %v683
          %708 = vst.msk [vmem:[#allocation2 + $0x8] sm:$0xff] %vm706, %v685
          %709 = vst.msk [vmem:[#allocation2 + $0x10] sm:$0xff] %vm706, %v687
          %710 = vst.msk [vmem:[#allocation2 + $0x18] sm:$0xff] %vm706, %v689
          %711 = vst.msk [vmem:[#allocation2 + $0x20] sm:$0xff] %vm706, %v691
          %712 = vst.msk [vmem:[#allocation2 + $0x28] sm:$0xff] %vm706, %v693
          %713 = vst.msk [vmem:[#allocation2 + $0x30] sm:$0xff] %vm706, %v695
          %714 = vst.msk [vmem:[#allocation2 + $0x38] sm:$0xff] %vm706, %v697
          %s715 = scalar_lea.vmem %s189, 12
          %v716 = vld [vmem:[%s715] sm:$0xf]
          %v717 = vld [vmem:[%s715 + $0x4] sm:$0xf]
          %v718 = vld [vmem:[%s715 + $0xc] sm:$0xf]
          %v719 = vld [vmem:[%s715 + $0x10] sm:$0xf]
          %v720 = vld [vmem:[%s715 + $0x18] sm:$0xf]
          %v721 = vld [vmem:[%s715 + $0x1c] sm:$0xf]
          %v722 = vld [vmem:[%s715 + $0x24] sm:$0xf]
          %v723 = vld [vmem:[%s715 + $0x28] sm:$0xf]
          %v724 = vld [vmem:[%s715 + $0x30] sm:$0xf]
          %v725 = vld [vmem:[%s715 + $0x34] sm:$0xf]
          %v726 = vld [vmem:[%s715 + $0x3c] sm:$0xf]
          %v727 = vld [vmem:[%s715 + $0x40] sm:$0xf]
          %v728 = vld [vmem:[%s715 + $0x48] sm:$0xf]
          %v729 = vld [vmem:[%s715 + $0x4c] sm:$0xf]
          %v730 = vld [vmem:[%s715 + $0x54] sm:$0xf]
          %v731 = vld [vmem:[%s715 + $0x58] sm:$0xf]
          %v748 = vunpack.c.l.b16 %v716
          %v749 = vunpack.c.l.b16 %v717
          %v750 = vunpack.c.l.b16 %v718
          %v751 = vunpack.c.l.b16 %v719
          %v752 = vunpack.c.l.b16 %v720
          %v753 = vunpack.c.l.b16 %v721
          %v754 = vunpack.c.l.b16 %v722
          %v755 = vunpack.c.l.b16 %v723
          %v756 = vunpack.c.l.b16 %v724
          %v757 = vunpack.c.l.b16 %v725
          %v758 = vunpack.c.l.b16 %v726
          %v759 = vunpack.c.l.b16 %v727
          %v760 = vunpack.c.l.b16 %v728
          %v761 = vunpack.c.l.b16 %v729
          %v762 = vunpack.c.l.b16 %v730
          %v763 = vunpack.c.l.b16 %v731
          %v764 = vpack.c.b16 %v749, %v748
          %v765 = vpack.c.b16 %v751, %v750
          %v766 = vpack.c.b16 %v753, %v752
          %v767 = vpack.c.b16 %v755, %v754
          %v768 = vpack.c.b16 %v757, %v756
          %v769 = vpack.c.b16 %v759, %v758
          %v770 = vpack.c.b16 %v761, %v760
          %v771 = vpack.c.b16 %v763, %v762
          %772 = vrot.lane.b32.xlu0 %v764, 12
          %v773 = vpop.permute.xlu0 %772
          %774 = vrot.lane.b32.xlu0 %v765, 12
          %v775 = vpop.permute.xlu0 %774
          %776 = vrot.lane.b32.xlu0 %v766, 12
          %v777 = vpop.permute.xlu0 %776
          %778 = vrot.lane.b32.xlu0 %v767, 12
          %v779 = vpop.permute.xlu0 %778
          %780 = vrot.lane.b32.xlu0 %v768, 12
          %v781 = vpop.permute.xlu0 %780
          %782 = vrot.lane.b32.xlu0 %v769, 12
          %v783 = vpop.permute.xlu0 %782
          %784 = vrot.lane.b32.xlu0 %v770, 12
          %v785 = vpop.permute.xlu0 %784
          %786 = vrot.lane.b32.xlu0 %v771, 12
          %v787 = vpop.permute.xlu0 %786
          %vm796 = vcmask 130144
          %797 = vst.msk [vmem:[#allocation2] sm:$0xff] %vm796, %v773
          %798 = vst.msk [vmem:[#allocation2 + $0x8] sm:$0xff] %vm796, %v775
          %799 = vst.msk [vmem:[#allocation2 + $0x10] sm:$0xff] %vm796, %v777
          %800 = vst.msk [vmem:[#allocation2 + $0x18] sm:$0xff] %vm796, %v779
          %801 = vst.msk [vmem:[#allocation2 + $0x20] sm:$0xff] %vm796, %v781
          %802 = vst.msk [vmem:[#allocation2 + $0x28] sm:$0xff] %vm796, %v783
          %803 = vst.msk [vmem:[#allocation2 + $0x30] sm:$0xff] %vm796, %v785
          %804 = vst.msk [vmem:[#allocation2 + $0x38] sm:$0xff] %vm796, %v787
          %v805 = vld [vmem:[%s715] sm:$0xf]
          %v806 = vld [vmem:[%s715 + $0x4] sm:$0xf]
          %v807 = vld [vmem:[%s715 + $0x8] sm:$0x1]
          %v808 = vld [vmem:[%s715 + $0xc] sm:$0xf]
          %v809 = vld [vmem:[%s715 + $0x10] sm:$0xf]
          %v810 = vld [vmem:[%s715 + $0x14] sm:$0x1]
          %v811 = vld [vmem:[%s715 + $0x18] sm:$0xf]
          %v812 = vld [vmem:[%s715 + $0x1c] sm:$0xf]
          %v813 = vld [vmem:[%s715 + $0x20] sm:$0x1]
          %v814 = vld [vmem:[%s715 + $0x24] sm:$0xf]
          %v815 = vld [vmem:[%s715 + $0x28] sm:$0xf]
          %v816 = vld [vmem:[%s715 + $0x2c] sm:$0x1]
          %v817 = vld [vmem:[%s715 + $0x30] sm:$0xf]
          %v818 = vld [vmem:[%s715 + $0x34] sm:$0xf]
          %v819 = vld [vmem:[%s715 + $0x38] sm:$0x1]
          %v820 = vld [vmem:[%s715 + $0x3c] sm:$0xf]
          %v821 = vld [vmem:[%s715 + $0x40] sm:$0xf]
          %v822 = vld [vmem:[%s715 + $0x44] sm:$0x1]
          %v823 = vld [vmem:[%s715 + $0x48] sm:$0xf]
          %v824 = vld [vmem:[%s715 + $0x4c] sm:$0xf]
          %v825 = vld [vmem:[%s715 + $0x50] sm:$0x1]
          %v826 = vld [vmem:[%s715 + $0x54] sm:$0xf]
          %v827 = vld [vmem:[%s715 + $0x58] sm:$0xf]
          %v828 = vld [vmem:[%s715 + $0x5c] sm:$0x1]
          %v830 = vshrl.u32 %v805, 16
          %v832 = vrot.slane %v830, 4
          %v833 = vshll.u32 %v805, 16
          %v835 = vrot.slane %v833, 5
          %v836 = vor.u32 %v832, %v835
          %v837 = vrot.slane %v836, 4
          %v839 = vshll.u32 %v806, 16
          %v841 = vrot.slane %v839, 5
          %v842 = vsel %vm301, %v837, %v841
          %v843 = vshrl.u32 %v806, 16
          %v845 = vrot.slane %v843, 4
          %v846 = vor.u32 %v845, %v841
          %v847 = vrot.slane %v846, 4
          %v849 = vshll.u32 %v807, 16
          %v851 = vrot.slane %v849, 5
          %v852 = vsel %vm301, %v847, %v851
          %v854 = vshrl.u32 %v808, 16
          %v856 = vrot.slane %v854, 4
          %v857 = vshll.u32 %v808, 16
          %v859 = vrot.slane %v857, 5
          %v860 = vor.u32 %v856, %v859
          %v861 = vrot.slane %v860, 4
          %v863 = vshll.u32 %v809, 16
          %v865 = vrot.slane %v863, 5
          %v866 = vsel %vm301, %v861, %v865
          %v867 = vshrl.u32 %v809, 16
          %v869 = vrot.slane %v867, 4
          %v870 = vor.u32 %v869, %v865
          %v871 = vrot.slane %v870, 4
          %v873 = vshll.u32 %v810, 16
          %v875 = vrot.slane %v873, 5
          %v876 = vsel %vm301, %v871, %v875
          %v878 = vshrl.u32 %v811, 16
          %v880 = vrot.slane %v878, 4
          %v881 = vshll.u32 %v811, 16
          %v883 = vrot.slane %v881, 5
          %v884 = vor.u32 %v880, %v883
          %v885 = vrot.slane %v884, 4
          %v887 = vshll.u32 %v812, 16
          %v889 = vrot.slane %v887, 5
          %v890 = vsel %vm301, %v885, %v889
          %v891 = vshrl.u32 %v812, 16
          %v893 = vrot.slane %v891, 4
          %v894 = vor.u32 %v893, %v889
          %v895 = vrot.slane %v894, 4
          %v897 = vshll.u32 %v813, 16
          %v899 = vrot.slane %v897, 5
          %v900 = vsel %vm301, %v895, %v899
          %v902 = vshrl.u32 %v814, 16
          %v904 = vrot.slane %v902, 4
          %v905 = vshll.u32 %v814, 16
          %v907 = vrot.slane %v905, 5
          %v908 = vor.u32 %v904, %v907
          %v909 = vrot.slane %v908, 4
          %v911 = vshll.u32 %v815, 16
          %v913 = vrot.slane %v911, 5
          %v914 = vsel %vm301, %v909, %v913
          %v915 = vshrl.u32 %v815, 16
          %v917 = vrot.slane %v915, 4
          %v918 = vor.u32 %v917, %v913
          %v919 = vrot.slane %v918, 4
          %v921 = vshll.u32 %v816, 16
          %v923 = vrot.slane %v921, 5
          %v924 = vsel %vm301, %v919, %v923
          %v926 = vshrl.u32 %v817, 16
          %v928 = vrot.slane %v926, 4
          %v929 = vshll.u32 %v817, 16
          %v931 = vrot.slane %v929, 5
          %v932 = vor.u32 %v928, %v931
          %v933 = vrot.slane %v932, 4
          %v935 = vshll.u32 %v818, 16
          %v937 = vrot.slane %v935, 5
          %v938 = vsel %vm301, %v933, %v937
          %v939 = vshrl.u32 %v818, 16
          %v941 = vrot.slane %v939, 4
          %v942 = vor.u32 %v941, %v937
          %v943 = vrot.slane %v942, 4
          %v945 = vshll.u32 %v819, 16
          %v947 = vrot.slane %v945, 5
          %v948 = vsel %vm301, %v943, %v947
          %v950 = vshrl.u32 %v820, 16
          %v952 = vrot.slane %v950, 4
          %v953 = vshll.u32 %v820, 16
          %v955 = vrot.slane %v953, 5
          %v956 = vor.u32 %v952, %v955
          %v957 = vrot.slane %v956, 4
          %v959 = vshll.u32 %v821, 16
          %v961 = vrot.slane %v959, 5
          %v962 = vsel %vm301, %v957, %v961
          %v963 = vshrl.u32 %v821, 16
          %v965 = vrot.slane %v963, 4
          %v966 = vor.u32 %v965, %v961
          %v967 = vrot.slane %v966, 4
          %v969 = vshll.u32 %v822, 16
          %v971 = vrot.slane %v969, 5
          %v972 = vsel %vm301, %v967, %v971
          %v974 = vshrl.u32 %v823, 16
          %v976 = vrot.slane %v974, 4
          %v977 = vshll.u32 %v823, 16
          %v979 = vrot.slane %v977, 5
          %v980 = vor.u32 %v976, %v979
          %v981 = vrot.slane %v980, 4
          %v983 = vshll.u32 %v824, 16
          %v985 = vrot.slane %v983, 5
          %v986 = vsel %vm301, %v981, %v985
          %v987 = vshrl.u32 %v824, 16
          %v989 = vrot.slane %v987, 4
          %v990 = vor.u32 %v989, %v985
          %v991 = vrot.slane %v990, 4
          %v993 = vshll.u32 %v825, 16
          %v995 = vrot.slane %v993, 5
          %v996 = vsel %vm301, %v991, %v995
          %v998 = vshrl.u32 %v826, 16
          %v1000 = vrot.slane %v998, 4
          %v1001 = vshll.u32 %v826, 16
          %v1003 = vrot.slane %v1001, 5
          %v1004 = vor.u32 %v1000, %v1003
          %v1005 = vrot.slane %v1004, 4
          %v1007 = vshll.u32 %v827, 16
          %v1009 = vrot.slane %v1007, 5
          %v1010 = vsel %vm301, %v1005, %v1009
          %v1011 = vshrl.u32 %v827, 16
          %v1013 = vrot.slane %v1011, 4
          %v1014 = vor.u32 %v1013, %v1009
          %v1015 = vrot.slane %v1014, 4
          %v1017 = vshll.u32 %v828, 16
          %v1019 = vrot.slane %v1017, 5
          %v1020 = vsel %vm301, %v1015, %v1019
          %v1021 = vunpack.c.l.b16 %v842
          %v1022 = vunpack.c.l.b16 %v852
          %v1023 = vunpack.c.l.b16 %v866
          %v1024 = vunpack.c.l.b16 %v876
          %v1025 = vunpack.c.l.b16 %v890
          %v1026 = vunpack.c.l.b16 %v900
          %v1027 = vunpack.c.l.b16 %v914
          %v1028 = vunpack.c.l.b16 %v924
          %v1029 = vunpack.c.l.b16 %v938
          %v1030 = vunpack.c.l.b16 %v948
          %v1031 = vunpack.c.l.b16 %v962
          %v1032 = vunpack.c.l.b16 %v972
          %v1033 = vunpack.c.l.b16 %v986
          %v1034 = vunpack.c.l.b16 %v996
          %v1035 = vunpack.c.l.b16 %v1010
          %v1036 = vunpack.c.l.b16 %v1020
          %v1037 = vpack.c.b16 %v1022, %v1021
          %v1038 = vpack.c.b16 %v1024, %v1023
          %v1039 = vpack.c.b16 %v1026, %v1025
          %v1040 = vpack.c.b16 %v1028, %v1027
          %v1041 = vpack.c.b16 %v1030, %v1029
          %v1042 = vpack.c.b16 %v1032, %v1031
          %v1043 = vpack.c.b16 %v1034, %v1033
          %v1044 = vpack.c.b16 %v1036, %v1035
          %1045 = vrot.lane.b32.xlu0 %v1037, 16
          %v1046 = vpop.permute.xlu0 %1045
          %1047 = vrot.lane.b32.xlu0 %v1038, 16
          %v1048 = vpop.permute.xlu0 %1047
          %1049 = vrot.lane.b32.xlu0 %v1039, 16
          %v1050 = vpop.permute.xlu0 %1049
          %1051 = vrot.lane.b32.xlu0 %v1040, 16
          %v1052 = vpop.permute.xlu0 %1051
          %1053 = vrot.lane.b32.xlu0 %v1041, 16
          %v1054 = vpop.permute.xlu0 %1053
          %1055 = vrot.lane.b32.xlu0 %v1042, 16
          %v1056 = vpop.permute.xlu0 %1055
          %1057 = vrot.lane.b32.xlu0 %v1043, 16
          %v1058 = vpop.permute.xlu0 %1057
          %1059 = vrot.lane.b32.xlu0 %v1044, 16
          %v1060 = vpop.permute.xlu0 %1059
          %vm1069 = vcmask 162944
          %1070 = vst.msk [vmem:[#allocation2] sm:$0xff] %vm1069, %v1046
          %1071 = vst.msk [vmem:[#allocation2 + $0x8] sm:$0xff] %vm1069, %v1048
          %1072 = vst.msk [vmem:[#allocation2 + $0x10] sm:$0xff] %vm1069, %v1050
          %1073 = vst.msk [vmem:[#allocation2 + $0x18] sm:$0xff] %vm1069, %v1052
          %1074 = vst.msk [vmem:[#allocation2 + $0x20] sm:$0xff] %vm1069, %v1054
          %1075 = vst.msk [vmem:[#allocation2 + $0x28] sm:$0xff] %vm1069, %v1056
          %1076 = vst.msk [vmem:[#allocation2 + $0x30] sm:$0xff] %vm1069, %v1058
          %1077 = vst.msk [vmem:[#allocation2 + $0x38] sm:$0xff] %vm1069, %v1060
          %v1078 = vld [vmem:[%s715] sm:$0xe]
          %v1079 = vld [vmem:[%s715 + $0x4] sm:$0xf]
          %v1080 = vld [vmem:[%s715 + $0x8] sm:$0x1]
          %v1081 = vld [vmem:[%s715 + $0xc] sm:$0xe]
          %v1082 = vld [vmem:[%s715 + $0x10] sm:$0xf]
          %v1083 = vld [vmem:[%s715 + $0x14] sm:$0x1]
          %v1084 = vld [vmem:[%s715 + $0x18] sm:$0xe]
          %v1085 = vld [vmem:[%s715 + $0x1c] sm:$0xf]
          %v1086 = vld [vmem:[%s715 + $0x20] sm:$0x1]
          %v1087 = vld [vmem:[%s715 + $0x24] sm:$0xe]
          %v1088 = vld [vmem:[%s715 + $0x28] sm:$0xf]
          %v1089 = vld [vmem:[%s715 + $0x2c] sm:$0x1]
          %v1090 = vld [vmem:[%s715 + $0x30] sm:$0xe]
          %v1091 = vld [vmem:[%s715 + $0x34] sm:$0xf]
          %v1092 = vld [vmem:[%s715 + $0x38] sm:$0x1]
          %v1093 = vld [vmem:[%s715 + $0x3c] sm:$0xe]
          %v1094 = vld [vmem:[%s715 + $0x40] sm:$0xf]
          %v1095 = vld [vmem:[%s715 + $0x44] sm:$0x1]
          %v1096 = vld [vmem:[%s715 + $0x48] sm:$0xe]
          %v1097 = vld [vmem:[%s715 + $0x4c] sm:$0xf]
          %v1098 = vld [vmem:[%s715 + $0x50] sm:$0x1]
          %v1099 = vld [vmem:[%s715 + $0x54] sm:$0xe]
          %v1100 = vld [vmem:[%s715 + $0x58] sm:$0xf]
          %v1101 = vld [vmem:[%s715 + $0x5c] sm:$0x1]
          %v1126 = vrot.slane %v1078, 5
          %v1127 = vrot.slane %v1126, 4
          %v1128 = vrot.slane %v1079, 5
          %v1129 = vsel %vm601, %v1127, %v1128
          %v1130 = vrot.slane %v1128, 4
          %v1131 = vrot.slane %v1080, 5
          %v1132 = vsel %vm601, %v1130, %v1131
          %v1133 = vrot.slane %v1081, 5
          %v1134 = vrot.slane %v1133, 4
          %v1135 = vrot.slane %v1082, 5
          %v1136 = vsel %vm601, %v1134, %v1135
          %v1137 = vrot.slane %v1135, 4
          %v1138 = vrot.slane %v1083, 5
          %v1139 = vsel %vm601, %v1137, %v1138
          %v1140 = vrot.slane %v1084, 5
          %v1141 = vrot.slane %v1140, 4
          %v1142 = vrot.slane %v1085, 5
          %v1143 = vsel %vm601, %v1141, %v1142
          %v1144 = vrot.slane %v1142, 4
          %v1145 = vrot.slane %v1086, 5
          %v1146 = vsel %vm601, %v1144, %v1145
          %v1147 = vrot.slane %v1087, 5
          %v1148 = vrot.slane %v1147, 4
          %v1149 = vrot.slane %v1088, 5
          %v1150 = vsel %vm601, %v1148, %v1149
          %v1151 = vrot.slane %v1149, 4
          %v1152 = vrot.slane %v1089, 5
          %v1153 = vsel %vm601, %v1151, %v1152
          %v1154 = vrot.slane %v1090, 5
          %v1155 = vrot.slane %v1154, 4
          %v1156 = vrot.slane %v1091, 5
          %v1157 = vsel %vm601, %v1155, %v1156
          %v1158 = vrot.slane %v1156, 4
          %v1159 = vrot.slane %v1092, 5
          %v1160 = vsel %vm601, %v1158, %v1159
          %v1161 = vrot.slane %v1093, 5
          %v1162 = vrot.slane %v1161, 4
          %v1163 = vrot.slane %v1094, 5
          %v1164 = vsel %vm601, %v1162, %v1163
          %v1165 = vrot.slane %v1163, 4
          %v1166 = vrot.slane %v1095, 5
          %v1167 = vsel %vm601, %v1165, %v1166
          %v1168 = vrot.slane %v1096, 5
          %v1169 = vrot.slane %v1168, 4
          %v1170 = vrot.slane %v1097, 5
          %v1171 = vsel %vm601, %v1169, %v1170
          %v1172 = vrot.slane %v1170, 4
          %v1173 = vrot.slane %v1098, 5
          %v1174 = vsel %vm601, %v1172, %v1173
          %v1175 = vrot.slane %v1099, 5
          %v1176 = vrot.slane %v1175, 4
          %v1177 = vrot.slane %v1100, 5
          %v1178 = vsel %vm601, %v1176, %v1177
          %v1179 = vrot.slane %v1177, 4
          %v1180 = vrot.slane %v1101, 5
          %v1181 = vsel %vm601, %v1179, %v1180
          %v1182 = vunpack.c.l.b16 %v1129
          %v1183 = vunpack.c.l.b16 %v1132
          %v1184 = vunpack.c.l.b16 %v1136
          %v1185 = vunpack.c.l.b16 %v1139
          %v1186 = vunpack.c.l.b16 %v1143
          %v1187 = vunpack.c.l.b16 %v1146
          %v1188 = vunpack.c.l.b16 %v1150
          %v1189 = vunpack.c.l.b16 %v1153
          %v1190 = vunpack.c.l.b16 %v1157
          %v1191 = vunpack.c.l.b16 %v1160
          %v1192 = vunpack.c.l.b16 %v1164
          %v1193 = vunpack.c.l.b16 %v1167
          %v1194 = vunpack.c.l.b16 %v1171
          %v1195 = vunpack.c.l.b16 %v1174
          %v1196 = vunpack.c.l.b16 %v1178
          %v1197 = vunpack.c.l.b16 %v1181
          %v1198 = vpack.c.b16 %v1183, %v1182
          %v1199 = vpack.c.b16 %v1185, %v1184
          %v1200 = vpack.c.b16 %v1187, %v1186
          %v1201 = vpack.c.b16 %v1189, %v1188
          %v1202 = vpack.c.b16 %v1191, %v1190
          %v1203 = vpack.c.b16 %v1193, %v1192
          %v1204 = vpack.c.b16 %v1195, %v1194
          %v1205 = vpack.c.b16 %v1197, %v1196
          %1206 = vrot.lane.b32.xlu0 %v1198, 20
          %v1207 = vpop.permute.xlu0 %1206
          %1208 = vrot.lane.b32.xlu0 %v1199, 20
          %v1209 = vpop.permute.xlu0 %1208
          %1210 = vrot.lane.b32.xlu0 %v1200, 20
          %v1211 = vpop.permute.xlu0 %1210
          %1212 = vrot.lane.b32.xlu0 %v1201, 20
          %v1213 = vpop.permute.xlu0 %1212
          %1214 = vrot.lane.b32.xlu0 %v1202, 20
          %v1215 = vpop.permute.xlu0 %1214
          %1216 = vrot.lane.b32.xlu0 %v1203, 20
          %v1217 = vpop.permute.xlu0 %1216
          %1218 = vrot.lane.b32.xlu0 %v1204, 20
          %v1219 = vpop.permute.xlu0 %1218
          %1220 = vrot.lane.b32.xlu0 %v1205, 20
          %v1221 = vpop.permute.xlu0 %1220
          %vm1230 = vcmask 195744
          %1231 = vst.msk [vmem:[#allocation2] sm:$0xff] %vm1230, %v1207
          %1232 = vst.msk [vmem:[#allocation2 + $0x8] sm:$0xff] %vm1230, %v1209
          %1233 = vst.msk [vmem:[#allocation2 + $0x10] sm:$0xff] %vm1230, %v1211
          %1234 = vst.msk [vmem:[#allocation2 + $0x18] sm:$0xff] %vm1230, %v1213
          %1235 = vst.msk [vmem:[#allocation2 + $0x20] sm:$0xff] %vm1230, %v1215
          %1236 = vst.msk [vmem:[#allocation2 + $0x28] sm:$0xff] %vm1230, %v1217
          %1237 = vst.msk [vmem:[#allocation2 + $0x30] sm:$0xff] %vm1230, %v1219
          %1238 = vst.msk [vmem:[#allocation2 + $0x38] sm:$0xff] %vm1230, %v1221
          %s1239 = scalar_lea.vmem %s189, 24
          %v1240 = vld [vmem:[%s1239] sm:$0xf]
          %v1241 = vld [vmem:[%s1239 + $0x4] sm:$0xf]
          %v1242 = vld [vmem:[%s1239 + $0xc] sm:$0xf]
          %v1243 = vld [vmem:[%s1239 + $0x10] sm:$0xf]
          %v1244 = vld [vmem:[%s1239 + $0x18] sm:$0xf]
          %v1245 = vld [vmem:[%s1239 + $0x1c] sm:$0xf]
          %v1246 = vld [vmem:[%s1239 + $0x24] sm:$0xf]
          %v1247 = vld [vmem:[%s1239 + $0x28] sm:$0xf]
          %v1248 = vld [vmem:[%s1239 + $0x30] sm:$0xf]
          %v1249 = vld [vmem:[%s1239 + $0x34] sm:$0xf]
          %v1250 = vld [vmem:[%s1239 + $0x3c] sm:$0xf]
          %v1251 = vld [vmem:[%s1239 + $0x40] sm:$0xf]
          %v1252 = vld [vmem:[%s1239 + $0x48] sm:$0xf]
          %v1253 = vld [vmem:[%s1239 + $0x4c] sm:$0xf]
          %v1254 = vld [vmem:[%s1239 + $0x54] sm:$0xf]
          %v1255 = vld [vmem:[%s1239 + $0x58] sm:$0xf]
          %v1272 = vunpack.c.l.b16 %v1240
          %v1273 = vunpack.c.l.b16 %v1241
          %v1274 = vunpack.c.l.b16 %v1242
          %v1275 = vunpack.c.l.b16 %v1243
          %v1276 = vunpack.c.l.b16 %v1244
          %v1277 = vunpack.c.l.b16 %v1245
          %v1278 = vunpack.c.l.b16 %v1246
          %v1279 = vunpack.c.l.b16 %v1247
          %v1280 = vunpack.c.l.b16 %v1248
          %v1281 = vunpack.c.l.b16 %v1249
          %v1282 = vunpack.c.l.b16 %v1250
          %v1283 = vunpack.c.l.b16 %v1251
          %v1284 = vunpack.c.l.b16 %v1252
          %v1285 = vunpack.c.l.b16 %v1253
          %v1286 = vunpack.c.l.b16 %v1254
          %v1287 = vunpack.c.l.b16 %v1255
          %v1288 = vpack.c.b16 %v1273, %v1272
          %v1289 = vpack.c.b16 %v1275, %v1274
          %v1290 = vpack.c.b16 %v1277, %v1276
          %v1291 = vpack.c.b16 %v1279, %v1278
          %v1292 = vpack.c.b16 %v1281, %v1280
          %v1293 = vpack.c.b16 %v1283, %v1282
          %v1294 = vpack.c.b16 %v1285, %v1284
          %v1295 = vpack.c.b16 %v1287, %v1286
          %1296 = vrot.lane.b32.xlu0 %v1288, 24
          %v1297 = vpop.permute.xlu0 %1296
          %1298 = vrot.lane.b32.xlu0 %v1289, 24
          %v1299 = vpop.permute.xlu0 %1298
          %1300 = vrot.lane.b32.xlu0 %v1290, 24
          %v1301 = vpop.permute.xlu0 %1300
          %1302 = vrot.lane.b32.xlu0 %v1291, 24
          %v1303 = vpop.permute.xlu0 %1302
          %1304 = vrot.lane.b32.xlu0 %v1292, 24
          %v1305 = vpop.permute.xlu0 %1304
          %1306 = vrot.lane.b32.xlu0 %v1293, 24
          %v1307 = vpop.permute.xlu0 %1306
          %1308 = vrot.lane.b32.xlu0 %v1294, 24
          %v1309 = vpop.permute.xlu0 %1308
          %1310 = vrot.lane.b32.xlu0 %v1295, 24
          %v1311 = vpop.permute.xlu0 %1310
          %vm1320 = vcmask 228544
          %1321 = vst.msk [vmem:[#allocation2] sm:$0xff] %vm1320, %v1297
          %1322 = vst.msk [vmem:[#allocation2 + $0x8] sm:$0xff] %vm1320, %v1299
          %1323 = vst.msk [vmem:[#allocation2 + $0x10] sm:$0xff] %vm1320, %v1301
          %1324 = vst.msk [vmem:[#allocation2 + $0x18] sm:$0xff] %vm1320, %v1303
          %1325 = vst.msk [vmem:[#allocation2 + $0x20] sm:$0xff] %vm1320, %v1305
          %1326 = vst.msk [vmem:[#allocation2 + $0x28] sm:$0xff] %vm1320, %v1307
          %1327 = vst.msk [vmem:[#allocation2 + $0x30] sm:$0xff] %vm1320, %v1309
          %1328 = vst.msk [vmem:[#allocation2 + $0x38] sm:$0xff] %vm1320, %v1311
          %v1329 = vld [vmem:[%s1239] sm:$0xf]
          %v1330 = vld [vmem:[%s1239 + $0x4] sm:$0xf]
          %v1331 = vld [vmem:[%s1239 + $0x8] sm:$0x1]
          %v1332 = vld [vmem:[%s1239 + $0xc] sm:$0xf]
          %v1333 = vld [vmem:[%s1239 + $0x10] sm:$0xf]
          %v1334 = vld [vmem:[%s1239 + $0x14] sm:$0x1]
          %v1335 = vld [vmem:[%s1239 + $0x18] sm:$0xf]
          %v1336 = vld [vmem:[%s1239 + $0x1c] sm:$0xf]
          %v1337 = vld [vmem:[%s1239 + $0x20] sm:$0x1]
          %v1338 = vld [vmem:[%s1239 + $0x24] sm:$0xf]
          %v1339 = vld [vmem:[%s1239 + $0x28] sm:$0xf]
          %v1340 = vld [vmem:[%s1239 + $0x2c] sm:$0x1]
          %v1341 = vld [vmem:[%s1239 + $0x30] sm:$0xf]
          %v1342 = vld [vmem:[%s1239 + $0x34] sm:$0xf]
          %v1343 = vld [vmem:[%s1239 + $0x38] sm:$0x1]
          %v1344 = vld [vmem:[%s1239 + $0x3c] sm:$0xf]
          %v1345 = vld [vmem:[%s1239 + $0x40] sm:$0xf]
          %v1346 = vld [vmem:[%s1239 + $0x44] sm:$0x1]
          %v1347 = vld [vmem:[%s1239 + $0x48] sm:$0xf]
          %v1348 = vld [vmem:[%s1239 + $0x4c] sm:$0xf]
          %v1349 = vld [vmem:[%s1239 + $0x50] sm:$0x1]
          %v1350 = vld [vmem:[%s1239 + $0x54] sm:$0xf]
          %v1351 = vld [vmem:[%s1239 + $0x58] sm:$0xf]
          %v1352 = vld [vmem:[%s1239 + $0x5c] sm:$0x1]
          %v1354 = vshrl.u32 %v1329, 16
          %v1356 = vrot.slane %v1354, 4
          %v1357 = vshll.u32 %v1329, 16
          %v1359 = vrot.slane %v1357, 5
          %v1360 = vor.u32 %v1356, %v1359
          %v1361 = vrot.slane %v1360, 4
          %v1363 = vshll.u32 %v1330, 16
          %v1365 = vrot.slane %v1363, 5
          %v1366 = vsel %vm301, %v1361, %v1365
          %v1367 = vshrl.u32 %v1330, 16
          %v1369 = vrot.slane %v1367, 4
          %v1370 = vor.u32 %v1369, %v1365
          %v1371 = vrot.slane %v1370, 4
          %v1373 = vshll.u32 %v1331, 16
          %v1375 = vrot.slane %v1373, 5
          %v1376 = vsel %vm301, %v1371, %v1375
          %v1378 = vshrl.u32 %v1332, 16
          %v1380 = vrot.slane %v1378, 4
          %v1381 = vshll.u32 %v1332, 16
          %v1383 = vrot.slane %v1381, 5
          %v1384 = vor.u32 %v1380, %v1383
          %v1385 = vrot.slane %v1384, 4
          %v1387 = vshll.u32 %v1333, 16
          %v1389 = vrot.slane %v1387, 5
          %v1390 = vsel %vm301, %v1385, %v1389
          %v1391 = vshrl.u32 %v1333, 16
          %v1393 = vrot.slane %v1391, 4
          %v1394 = vor.u32 %v1393, %v1389
          %v1395 = vrot.slane %v1394, 4
          %v1397 = vshll.u32 %v1334, 16
          %v1399 = vrot.slane %v1397, 5
          %v1400 = vsel %vm301, %v1395, %v1399
          %v1402 = vshrl.u32 %v1335, 16
          %v1404 = vrot.slane %v1402, 4
          %v1405 = vshll.u32 %v1335, 16
          %v1407 = vrot.slane %v1405, 5
          %v1408 = vor.u32 %v1404, %v1407
          %v1409 = vrot.slane %v1408, 4
          %v1411 = vshll.u32 %v1336, 16
          %v1413 = vrot.slane %v1411, 5
          %v1414 = vsel %vm301, %v1409, %v1413
          %v1415 = vshrl.u32 %v1336, 16
          %v1417 = vrot.slane %v1415, 4
          %v1418 = vor.u32 %v1417, %v1413
          %v1419 = vrot.slane %v1418, 4
          %v1421 = vshll.u32 %v1337, 16
          %v1423 = vrot.slane %v1421, 5
          %v1424 = vsel %vm301, %v1419, %v1423
          %v1426 = vshrl.u32 %v1338, 16
          %v1428 = vrot.slane %v1426, 4
          %v1429 = vshll.u32 %v1338, 16
          %v1431 = vrot.slane %v1429, 5
          %v1432 = vor.u32 %v1428, %v1431
          %v1433 = vrot.slane %v1432, 4
          %v1435 = vshll.u32 %v1339, 16
          %v1437 = vrot.slane %v1435, 5
          %v1438 = vsel %vm301, %v1433, %v1437
          %v1439 = vshrl.u32 %v1339, 16
          %v1441 = vrot.slane %v1439, 4
          %v1442 = vor.u32 %v1441, %v1437
          %v1443 = vrot.slane %v1442, 4
          %v1445 = vshll.u32 %v1340, 16
          %v1447 = vrot.slane %v1445, 5
          %v1448 = vsel %vm301, %v1443, %v1447
          %v1450 = vshrl.u32 %v1341, 16
          %v1452 = vrot.slane %v1450, 4
          %v1453 = vshll.u32 %v1341, 16
          %v1455 = vrot.slane %v1453, 5
          %v1456 = vor.u32 %v1452, %v1455
          %v1457 = vrot.slane %v1456, 4
          %v1459 = vshll.u32 %v1342, 16
          %v1461 = vrot.slane %v1459, 5
          %v1462 = vsel %vm301, %v1457, %v1461
          %v1463 = vshrl.u32 %v1342, 16
          %v1465 = vrot.slane %v1463, 4
          %v1466 = vor.u32 %v1465, %v1461
          %v1467 = vrot.slane %v1466, 4
          %v1469 = vshll.u32 %v1343, 16
          %v1471 = vrot.slane %v1469, 5
          %v1472 = vsel %vm301, %v1467, %v1471
          %v1474 = vshrl.u32 %v1344, 16
          %v1476 = vrot.slane %v1474, 4
          %v1477 = vshll.u32 %v1344, 16
          %v1479 = vrot.slane %v1477, 5
          %v1480 = vor.u32 %v1476, %v1479
          %v1481 = vrot.slane %v1480, 4
          %v1483 = vshll.u32 %v1345, 16
          %v1485 = vrot.slane %v1483, 5
          %v1486 = vsel %vm301, %v1481, %v1485
          %v1487 = vshrl.u32 %v1345, 16
          %v1489 = vrot.slane %v1487, 4
          %v1490 = vor.u32 %v1489, %v1485
          %v1491 = vrot.slane %v1490, 4
          %v1493 = vshll.u32 %v1346, 16
          %v1495 = vrot.slane %v1493, 5
          %v1496 = vsel %vm301, %v1491, %v1495
          %v1498 = vshrl.u32 %v1347, 16
          %v1500 = vrot.slane %v1498, 4
          %v1501 = vshll.u32 %v1347, 16
          %v1503 = vrot.slane %v1501, 5
          %v1504 = vor.u32 %v1500, %v1503
          %v1505 = vrot.slane %v1504, 4
          %v1507 = vshll.u32 %v1348, 16
          %v1509 = vrot.slane %v1507, 5
          %v1510 = vsel %vm301, %v1505, %v1509
          %v1511 = vshrl.u32 %v1348, 16
          %v1513 = vrot.slane %v1511, 4
          %v1514 = vor.u32 %v1513, %v1509
          %v1515 = vrot.slane %v1514, 4
          %v1517 = vshll.u32 %v1349, 16
          %v1519 = vrot.slane %v1517, 5
          %v1520 = vsel %vm301, %v1515, %v1519
          %v1522 = vshrl.u32 %v1350, 16
          %v1524 = vrot.slane %v1522, 4
          %v1525 = vshll.u32 %v1350, 16
          %v1527 = vrot.slane %v1525, 5
          %v1528 = vor.u32 %v1524, %v1527
          %v1529 = vrot.slane %v1528, 4
          %v1531 = vshll.u32 %v1351, 16
          %v1533 = vrot.slane %v1531, 5
          %v1534 = vsel %vm301, %v1529, %v1533
          %v1535 = vshrl.u32 %v1351, 16
          %v1537 = vrot.slane %v1535, 4
          %v1538 = vor.u32 %v1537, %v1533
          %v1539 = vrot.slane %v1538, 4
          %v1541 = vshll.u32 %v1352, 16
          %v1543 = vrot.slane %v1541, 5
          %v1544 = vsel %vm301, %v1539, %v1543
          %v1545 = vunpack.c.l.b16 %v1366
          %v1546 = vunpack.c.l.b16 %v1376
          %v1547 = vunpack.c.l.b16 %v1390
          %v1548 = vunpack.c.l.b16 %v1400
          %v1549 = vunpack.c.l.b16 %v1414
          %v1550 = vunpack.c.l.b16 %v1424
          %v1551 = vunpack.c.l.b16 %v1438
          %v1552 = vunpack.c.l.b16 %v1448
          %v1553 = vunpack.c.l.b16 %v1462
          %v1554 = vunpack.c.l.b16 %v1472
          %v1555 = vunpack.c.l.b16 %v1486
          %v1556 = vunpack.c.l.b16 %v1496
          %v1557 = vunpack.c.l.b16 %v1510
          %v1558 = vunpack.c.l.b16 %v1520
          %v1559 = vunpack.c.l.b16 %v1534
          %v1560 = vunpack.c.l.b16 %v1544
          %v1561 = vpack.c.b16 %v1546, %v1545
          %v1562 = vpack.c.b16 %v1548, %v1547
          %v1563 = vpack.c.b16 %v1550, %v1549
          %v1564 = vpack.c.b16 %v1552, %v1551
          %v1565 = vpack.c.b16 %v1554, %v1553
          %v1566 = vpack.c.b16 %v1556, %v1555
          %v1567 = vpack.c.b16 %v1558, %v1557
          %v1568 = vpack.c.b16 %v1560, %v1559
          %1569 = vrot.lane.b32.xlu0 %v1561, 28
          %v1570 = vpop.permute.xlu0 %1569
          %1571 = vrot.lane.b32.xlu0 %v1562, 28
          %v1572 = vpop.permute.xlu0 %1571
          %1573 = vrot.lane.b32.xlu0 %v1563, 28
          %v1574 = vpop.permute.xlu0 %1573
          %1575 = vrot.lane.b32.xlu0 %v1564, 28
          %v1576 = vpop.permute.xlu0 %1575
          %1577 = vrot.lane.b32.xlu0 %v1565, 28
          %v1578 = vpop.permute.xlu0 %1577
          %1579 = vrot.lane.b32.xlu0 %v1566, 28
          %v1580 = vpop.permute.xlu0 %1579
          %1581 = vrot.lane.b32.xlu0 %v1567, 28
          %v1582 = vpop.permute.xlu0 %1581
          %1583 = vrot.lane.b32.xlu0 %v1568, 28
          %v1584 = vpop.permute.xlu0 %1583
          %vm1593 = vcmask 261344
          %1594 = vst.msk [vmem:[#allocation2] sm:$0xff] %vm1593, %v1570
          %1595 = vst.msk [vmem:[#allocation2 + $0x8] sm:$0xff] %vm1593, %v1572
          %1596 = vst.msk [vmem:[#allocation2 + $0x10] sm:$0xff] %vm1593, %v1574
          %1597 = vst.msk [vmem:[#allocation2 + $0x18] sm:$0xff] %vm1593, %v1576
          %1598 = vst.msk [vmem:[#allocation2 + $0x20] sm:$0xff] %vm1593, %v1578
          %1599 = vst.msk [vmem:[#allocation2 + $0x28] sm:$0xff] %vm1593, %v1580
          %1600 = vst.msk [vmem:[#allocation2 + $0x30] sm:$0xff] %vm1593, %v1582
          %1601 = vst.msk [vmem:[#allocation2 + $0x38] sm:$0xff] %vm1593, %v1584
          %v1602 = vld [vmem:[%s1239] sm:$0xe]
          %v1603 = vld [vmem:[%s1239 + $0x4] sm:$0xf]
          %v1604 = vld [vmem:[%s1239 + $0x8] sm:$0x1]
          %v1605 = vld [vmem:[%s1239 + $0xc] sm:$0xe]
          %v1606 = vld [vmem:[%s1239 + $0x10] sm:$0xf]
          %v1607 = vld [vmem:[%s1239 + $0x14] sm:$0x1]
          %v1608 = vld [vmem:[%s1239 + $0x18] sm:$0xe]
          %v1609 = vld [vmem:[%s1239 + $0x1c] sm:$0xf]
          %v1610 = vld [vmem:[%s1239 + $0x20] sm:$0x1]
          %v1611 = vld [vmem:[%s1239 + $0x24] sm:$0xe]
          %v1612 = vld [vmem:[%s1239 + $0x28] sm:$0xf]
          %v1613 = vld [vmem:[%s1239 + $0x2c] sm:$0x1]
          %v1614 = vld [vmem:[%s1239 + $0x30] sm:$0xe]
          %v1615 = vld [vmem:[%s1239 + $0x34] sm:$0xf]
          %v1616 = vld [vmem:[%s1239 + $0x38] sm:$0x1]
          %v1617 = vld [vmem:[%s1239 + $0x3c] sm:$0xe]
          %v1618 = vld [vmem:[%s1239 + $0x40] sm:$0xf]
          %v1619 = vld [vmem:[%s1239 + $0x44] sm:$0x1]
          %v1620 = vld [vmem:[%s1239 + $0x48] sm:$0xe]
          %v1621 = vld [vmem:[%s1239 + $0x4c] sm:$0xf]
          %v1622 = vld [vmem:[%s1239 + $0x50] sm:$0x1]
          %v1623 = vld [vmem:[%s1239 + $0x54] sm:$0xe]
          %v1624 = vld [vmem:[%s1239 + $0x58] sm:$0xf]
          %v1625 = vld [vmem:[%s1239 + $0x5c] sm:$0x1]
          %v1650 = vrot.slane %v1602, 5
          %v1651 = vrot.slane %v1650, 4
          %v1652 = vrot.slane %v1603, 5
          %v1653 = vsel %vm601, %v1651, %v1652
          %v1654 = vrot.slane %v1652, 4
          %v1655 = vrot.slane %v1604, 5
          %v1656 = vsel %vm601, %v1654, %v1655
          %v1657 = vrot.slane %v1605, 5
          %v1658 = vrot.slane %v1657, 4
          %v1659 = vrot.slane %v1606, 5
          %v1660 = vsel %vm601, %v1658, %v1659
          %v1661 = vrot.slane %v1659, 4
          %v1662 = vrot.slane %v1607, 5
          %v1663 = vsel %vm601, %v1661, %v1662
          %v1664 = vrot.slane %v1608, 5
          %v1665 = vrot.slane %v1664, 4
          %v1666 = vrot.slane %v1609, 5
          %v1667 = vsel %vm601, %v1665, %v1666
          %v1668 = vrot.slane %v1666, 4
          %v1669 = vrot.slane %v1610, 5
          %v1670 = vsel %vm601, %v1668, %v1669
          %v1671 = vrot.slane %v1611, 5
          %v1672 = vrot.slane %v1671, 4
          %v1673 = vrot.slane %v1612, 5
          %v1674 = vsel %vm601, %v1672, %v1673
          %v1675 = vrot.slane %v1673, 4
          %v1676 = vrot.slane %v1613, 5
          %v1677 = vsel %vm601, %v1675, %v1676
          %v1678 = vrot.slane %v1614, 5
          %v1679 = vrot.slane %v1678, 4
          %v1680 = vrot.slane %v1615, 5
          %v1681 = vsel %vm601, %v1679, %v1680
          %v1682 = vrot.slane %v1680, 4
          %v1683 = vrot.slane %v1616, 5
          %v1684 = vsel %vm601, %v1682, %v1683
          %v1685 = vrot.slane %v1617, 5
          %v1686 = vrot.slane %v1685, 4
          %v1687 = vrot.slane %v1618, 5
          %v1688 = vsel %vm601, %v1686, %v1687
          %v1689 = vrot.slane %v1687, 4
          %v1690 = vrot.slane %v1619, 5
          %v1691 = vsel %vm601, %v1689, %v1690
          %v1692 = vrot.slane %v1620, 5
          %v1693 = vrot.slane %v1692, 4
          %v1694 = vrot.slane %v1621, 5
          %v1695 = vsel %vm601, %v1693, %v1694
          %v1696 = vrot.slane %v1694, 4
          %v1697 = vrot.slane %v1622, 5
          %v1698 = vsel %vm601, %v1696, %v1697
          %v1699 = vrot.slane %v1623, 5
          %v1700 = vrot.slane %v1699, 4
          %v1701 = vrot.slane %v1624, 5
          %v1702 = vsel %vm601, %v1700, %v1701
          %v1703 = vrot.slane %v1701, 4
          %v1704 = vrot.slane %v1625, 5
          %v1705 = vsel %vm601, %v1703, %v1704
          %v1706 = vunpack.c.l.b16 %v1653
          %v1707 = vunpack.c.l.b16 %v1656
          %v1708 = vunpack.c.l.b16 %v1660
          %v1709 = vunpack.c.l.b16 %v1663
          %v1710 = vunpack.c.l.b16 %v1667
          %v1711 = vunpack.c.l.b16 %v1670
          %v1712 = vunpack.c.l.b16 %v1674
          %v1713 = vunpack.c.l.b16 %v1677
          %v1714 = vunpack.c.l.b16 %v1681
          %v1715 = vunpack.c.l.b16 %v1684
          %v1716 = vunpack.c.l.b16 %v1688
          %v1717 = vunpack.c.l.b16 %v1691
          %v1718 = vunpack.c.l.b16 %v1695
          %v1719 = vunpack.c.l.b16 %v1698
          %v1720 = vunpack.c.l.b16 %v1702
          %v1721 = vunpack.c.l.b16 %v1705
          %v1722 = vpack.c.b16 %v1707, %v1706
          %v1723 = vpack.c.b16 %v1709, %v1708
          %v1724 = vpack.c.b16 %v1711, %v1710
          %v1725 = vpack.c.b16 %v1713, %v1712
          %v1726 = vpack.c.b16 %v1715, %v1714
          %v1727 = vpack.c.b16 %v1717, %v1716
          %v1728 = vpack.c.b16 %v1719, %v1718
          %v1729 = vpack.c.b16 %v1721, %v1720
          %1730 = vrot.lane.b32.xlu0 %v1722, 32
          %v1731 = vpop.permute.xlu0 %1730
          %1732 = vrot.lane.b32.xlu0 %v1723, 32
          %v1733 = vpop.permute.xlu0 %1732
          %1734 = vrot.lane.b32.xlu0 %v1724, 32
          %v1735 = vpop.permute.xlu0 %1734
          %1736 = vrot.lane.b32.xlu0 %v1725, 32
          %v1737 = vpop.permute.xlu0 %1736
          %1738 = vrot.lane.b32.xlu0 %v1726, 32
          %v1739 = vpop.permute.xlu0 %1738
          %1740 = vrot.lane.b32.xlu0 %v1727, 32
          %v1741 = vpop.permute.xlu0 %1740
          %1742 = vrot.lane.b32.xlu0 %v1728, 32
          %v1743 = vpop.permute.xlu0 %1742
          %1744 = vrot.lane.b32.xlu0 %v1729, 32
          %v1745 = vpop.permute.xlu0 %1744
          %vm1754 = vcmask 294144
          %1755 = vst.msk [vmem:[#allocation2] sm:$0xff] %vm1754, %v1731
          %1756 = vst.msk [vmem:[#allocation2 + $0x8] sm:$0xff] %vm1754, %v1733
          %1757 = vst.msk [vmem:[#allocation2 + $0x10] sm:$0xff] %vm1754, %v1735
          %1758 = vst.msk [vmem:[#allocation2 + $0x18] sm:$0xff] %vm1754, %v1737
          %1759 = vst.msk [vmem:[#allocation2 + $0x20] sm:$0xff] %vm1754, %v1739
          %1760 = vst.msk [vmem:[#allocation2 + $0x28] sm:$0xff] %vm1754, %v1741
          %1761 = vst.msk [vmem:[#allocation2 + $0x30] sm:$0xff] %vm1754, %v1743
          %1762 = vst.msk [vmem:[#allocation2 + $0x38] sm:$0xff] %vm1754, %v1745
        $region32: #{tpu_custom_call.1} parent=27 // pred_fallthru
          _
        %v1763 = vld [vmem:[#allocation2] sm:$0xff]
        %v1764 = vld [vmem:[#allocation2 + $0x8] sm:$0xff]
        %v1765 = vld [vmem:[#allocation2 + $0x10] sm:$0xff]
        %v1766 = vld [vmem:[#allocation2 + $0x18] sm:$0xff]
        %v1767 = vld [vmem:[#allocation2 + $0x20] sm:$0xff]
        %v1768 = vld [vmem:[#allocation2 + $0x28] sm:$0xff]
        %v1769 = vld [vmem:[#allocation2 + $0x30] sm:$0xff]
        %v1770 = vld [vmem:[#allocation2 + $0x38] sm:$0xff]
        %v1771 = vld [vmem:[%s195] sm:$0xf]
        %v1772 = vld [vmem:[%s195 + $0x4] sm:$0xf]
        %v1773 = vld [vmem:[%s195 + $0x8] sm:$0xf]
        %v1774 = vld [vmem:[%s195 + $0xc] sm:$0xf]
        %v1775 = vld [vmem:[%s195 + $0x10] sm:$0x3]
        %v1781 = vunpack.c.l.b16 %v1771
        %v1782 = vunpack.c.l.b16 %v1772
        %v1783 = vunpack.c.l.b16 %v1773
        %v1784 = vunpack.c.l.b16 %v1774
        %v1785 = vunpack.c.l.b16 %v1775
        %v1786 = vpack.c.b16 %v1782, %v1781
        %v1787 = vpack.c.b16 %v1784, %v1783
        %v1788 = vpack.c.b16 %v1785, %v1785
        %vm1791 = vcmask 293888
        %v1793 = vsel %vm1791, %v1763, 0
        %v1796 = vsel %vm1791, %v1764, 0
        %v1799 = vsel %vm1791, %v1765, 0
        %v1802 = vsel %vm1791, %v1766, 0
        %v1805 = vsel %vm1791, %v1767, 0
        %v1808 = vsel %vm1791, %v1768, 0
        %v1811 = vsel %vm1791, %v1769, 0
        %v1814 = vsel %vm1791, %v1770, 0
        %vm1816 = vcmask 1041408
        %v1818 = vsel %vm1816, %v1788, 0
        %1820 = vmatprep.subr.bf16.mxu0 0
        %1821 = vmatpush1.bf16.msra.mxu0 %v1786
        %1822 = vmatprep.subr.bf16.mxu0 0
        %1823 = vmatpush1.bf16.msra.mxu0 %v1787
        %1824 = vmatprep.subr.bf16.mxu0 0
        %1825 = vmatpush1.bf16.msra.mxu0 %v1818
        %1826 = vmatprep.subr.bf16.mxu0 0
        %1827 = vmatpush1.bf16.msra.mxu0 0
        %1828 = vmatprep.subr.bf16.mxu0 0
        %1829 = vmatpush1.bf16.msra.mxu0 0
        %1830 = vmatprep.subr.bf16.mxu0 0
        %1831 = vmatpush1.bf16.msra.mxu0 0
        %1832 = vmatprep.subr.bf16.mxu0 0
        %1833 = vmatpush1.bf16.msra.mxu0 0
        %1834 = vmatprep.subr.bf16.mxu0 0
        %1835 = vmatpush1.bf16.msra.mxu0 0
        %1836 = vmatprep.subr.bf16.mxu0 0
        %1837 = vmatpush1.bf16.msra.mxu0 0
        %1838 = vmatprep.subr.bf16.mxu0 0
        %1839 = vmatpush1.bf16.msra.mxu0 0
        %1840 = vmatprep.subr.bf16.mxu0 0
        %1841 = vmatpush1.bf16.msra.mxu0 0
        %1842 = vmatprep.subr.bf16.mxu0 0
        %1843 = vmatpush1.bf16.msra.mxu0 0
        %1844 = vmatprep.subr.bf16.mxu0 0
        %1845 = vmatpush1.bf16.msra.mxu0 0
        %1846 = vmatprep.subr.bf16.mxu0 0
        %1847 = vmatpush1.bf16.msra.mxu0 0
        %1848 = vmatprep.subr.bf16.mxu0 0
        %1849 = vmatpush1.bf16.msra.mxu0 0
        %1850 = vmatprep.subr.bf16.mxu0 0
        %1851 = vmatpush1.bf16.msra.mxu0 0
        %1852 = vmatprep.mubr.bf16.mxu0 0
        %1853 = vmatmul.mubr.bf16.gmra.mrb[0].mxu0 %v1793
        %v1854 = vpop.f32.mrb[0].mxu0
        %v1855 = vadd.f32 0.0, %v1854
        %v1856 = vpop.f32.mrb[0].mxu0
        %v1857 = vpop.f32.mrb[0].mxu0
        %v1858 = vadd.f32 0.0, %v1857
        %v1859 = vpop.f32.mrb[0].mxu0
        %1860 = vmatprep.mubr.bf16.mxu0 0
        %1861 = vmatmul.mubr.bf16.gmra.mrb[0].mxu0 %v1796
        %v1862 = vpop.f32.mrb[0].mxu0
        %v1863 = vadd.f32 0.0, %v1862
        %v1864 = vpop.f32.mrb[0].mxu0
        %v1865 = vpop.f32.mrb[0].mxu0
        %v1866 = vadd.f32 0.0, %v1865
        %v1867 = vpop.f32.mrb[0].mxu0
        %1868 = vmatprep.mubr.bf16.mxu0 0
        %1869 = vmatmul.mubr.bf16.gmra.mrb[0].mxu0 %v1799
        %v1870 = vpop.f32.mrb[0].mxu0
        %v1871 = vadd.f32 0.0, %v1870
        %v1872 = vpop.f32.mrb[0].mxu0
        %v1873 = vpop.f32.mrb[0].mxu0
        %v1874 = vadd.f32 0.0, %v1873
        %v1875 = vpop.f32.mrb[0].mxu0
        %1876 = vmatprep.mubr.bf16.mxu0 0
        %1877 = vmatmul.mubr.bf16.gmra.mrb[0].mxu0 %v1802
        %v1878 = vpop.f32.mrb[0].mxu0
        %v1879 = vadd.f32 0.0, %v1878
        %v1880 = vpop.f32.mrb[0].mxu0
        %v1881 = vpop.f32.mrb[0].mxu0
        %v1882 = vadd.f32 0.0, %v1881
        %v1883 = vpop.f32.mrb[0].mxu0
        %1884 = vmatprep.mubr.bf16.mxu0 0
        %1885 = vmatmul.mubr.bf16.gmra.mrb[0].mxu0 %v1805
        %v1886 = vpop.f32.mrb[0].mxu0
        %v1887 = vadd.f32 0.0, %v1886
        %v1888 = vpop.f32.mrb[0].mxu0
        %v1889 = vpop.f32.mrb[0].mxu0
        %v1890 = vadd.f32 0.0, %v1889
        %v1891 = vpop.f32.mrb[0].mxu0
        %1892 = vmatprep.mubr.bf16.mxu0 0
        %1893 = vmatmul.mubr.bf16.gmra.mrb[0].mxu0 %v1808
        %v1894 = vpop.f32.mrb[0].mxu0
        %v1895 = vadd.f32 0.0, %v1894
        %v1896 = vpop.f32.mrb[0].mxu0
        %v1897 = vpop.f32.mrb[0].mxu0
        %v1898 = vadd.f32 0.0, %v1897
        %v1899 = vpop.f32.mrb[0].mxu0
        %1900 = vmatprep.mubr.bf16.mxu0 0
        %1901 = vmatmul.mubr.bf16.gmra.mrb[0].mxu0 %v1811
        %v1902 = vpop.f32.mrb[0].mxu0
        %v1903 = vadd.f32 0.0, %v1902
        %v1904 = vpop.f32.mrb[0].mxu0
        %v1905 = vpop.f32.mrb[0].mxu0
        %v1906 = vadd.f32 0.0, %v1905
        %v1907 = vpop.f32.mrb[0].mxu0
        %1908 = vmatprep.mubr.bf16.mxu0 0
        %1909 = vmatmul.mubr.bf16.gmra.mrb[0].mxu0 %v1814
        %v1910 = vpop.f32.mrb[0].mxu0
        %v1911 = vadd.f32 0.0, %v1910
        %v1912 = vpop.f32.mrb[0].mxu0
        %v1913 = vpop.f32.mrb[0].mxu0
        %v1914 = vadd.f32 0.0, %v1913
        %v1915 = vpop.f32.mrb[0].mxu0
        %1916 = vdwg.mxu0
        %vm1917 = vcmp.ge.f32.partialorder %v1855, 0.0
        %vm1918 = vcmp.ge.f32.partialorder %v1858, 0.0
        %vm1919 = vcmp.ge.f32.partialorder %v1863, 0.0
        %vm1920 = vcmp.ge.f32.partialorder %v1866, 0.0
        %vm1921 = vcmp.ge.f32.partialorder %v1871, 0.0
        %vm1922 = vcmp.ge.f32.partialorder %v1874, 0.0
        %vm1923 = vcmp.ge.f32.partialorder %v1879, 0.0
        %vm1924 = vcmp.ge.f32.partialorder %v1882, 0.0
        %vm1925 = vcmp.ge.f32.partialorder %v1887, 0.0
        %vm1926 = vcmp.ge.f32.partialorder %v1890, 0.0
        %vm1927 = vcmp.ge.f32.partialorder %v1895, 0.0
        %vm1928 = vcmp.ge.f32.partialorder %v1898, 0.0
        %vm1929 = vcmp.ge.f32.partialorder %v1903, 0.0
        %vm1930 = vcmp.ge.f32.partialorder %v1906, 0.0
        %vm1931 = vcmp.ge.f32.partialorder %v1911, 0.0
        %vm1932 = vcmp.ge.f32.partialorder %v1914, 0.0
        %v1933 = vmul.f32 %v1855, 0.1
        %v1934 = vmul.f32 %v1858, 0.1
        %v1935 = vmul.f32 %v1863, 0.1
        %v1936 = vmul.f32 %v1866, 0.1
        %v1937 = vmul.f32 %v1871, 0.1
        %v1938 = vmul.f32 %v1874, 0.1
        %v1939 = vmul.f32 %v1879, 0.1
        %v1940 = vmul.f32 %v1882, 0.1
        %v1941 = vmul.f32 %v1887, 0.1
        %v1942 = vmul.f32 %v1890, 0.1
        %v1943 = vmul.f32 %v1895, 0.1
        %v1944 = vmul.f32 %v1898, 0.1
        %v1945 = vmul.f32 %v1903, 0.1
        %v1946 = vmul.f32 %v1906, 0.1
        %v1947 = vmul.f32 %v1911, 0.1
        %v1948 = vmul.f32 %v1914, 0.1
        %v1949 = vsel %vm1917, %v1855, %v1933
        %v1950 = vsel %vm1918, %v1858, %v1934
        %v1951 = vsel %vm1919, %v1863, %v1935
        %v1952 = vsel %vm1920, %v1866, %v1936
        %v1953 = vsel %vm1921, %v1871, %v1937
        %v1954 = vsel %vm1922, %v1874, %v1938
        %v1955 = vsel %vm1923, %v1879, %v1939
        %v1956 = vsel %vm1924, %v1882, %v1940
        %v1957 = vsel %vm1925, %v1887, %v1941
        %v1958 = vsel %vm1926, %v1890, %v1942
        %v1959 = vsel %vm1927, %v1895, %v1943
        %v1960 = vsel %vm1928, %v1898, %v1944
        %v1961 = vsel %vm1929, %v1903, %v1945
        %v1962 = vsel %vm1930, %v1906, %v1946
        %v1963 = vsel %vm1931, %v1911, %v1947
        %v1964 = vsel %vm1932, %v1914, %v1948
        %1965 = vst [vmem:[%s182] sm:$0xff] %v1949
        %1966 = vst [vmem:[%s182 + $0x8] sm:$0xff] %v1950
        %1967 = vst [vmem:[%s182 + $0x10] sm:$0xff] %v1951
        %1968 = vst [vmem:[%s182 + $0x18] sm:$0xff] %v1952
        %1969 = vst [vmem:[%s182 + $0x20] sm:$0xff] %v1953
        %1970 = vst [vmem:[%s182 + $0x28] sm:$0xff] %v1954
        %1971 = vst [vmem:[%s182 + $0x30] sm:$0xff] %v1955
        %1972 = vst [vmem:[%s182 + $0x38] sm:$0xff] %v1956
        %1973 = vst [vmem:[%s182 + $0x40] sm:$0xff] %v1957
        %1974 = vst [vmem:[%s182 + $0x48] sm:$0xff] %v1958
        %1975 = vst [vmem:[%s182 + $0x50] sm:$0xff] %v1959
        %1976 = vst [vmem:[%s182 + $0x58] sm:$0xff] %v1960
        %1977 = vst [vmem:[%s182 + $0x60] sm:$0xff] %v1961
        %1978 = vst [vmem:[%s182 + $0x68] sm:$0xff] %v1962
        %1979 = vst [vmem:[%s182 + $0x70] sm:$0xff] %v1963
        %1980 = vst [vmem:[%s182 + $0x78] sm:$0xff] %v1964
        %s1981 = sand.u32 %s103, 1
        %s1982 = scalar_lea.sflag [#allocation4], %s1981
        %s1983 = sand.u32 %s103, 1
        %s1984 = smul.addr %s1983, 128
        %s1985 = scalar_lea.vmem [#allocation3], %s1984
        // Predicated region
        $region33: #{tpu_custom_call.1} parent=27 // pred_check
          %p1986 = pneg %p113
        $region34: #{tpu_custom_call.1} parent=27 // pred_check_branch
          %1988 = sbr.rel (%p1986) target = $region36
        $region35: #{tpu_custom_call.1} parent=27 // pred_region
          %s1989 = smul.u32 16, %s22
          %s1991 = ssub.s32 2048, 2048
          %1992 = vsyncadd %s1982, %s1991
          %s1993 = sadd.s32 %s23, %s1989
          %s1994 = smul.addr %s21, 32
          %s1995 = sadd.s32 %s1993, %s1994
          %s1996 = smul.addr %s1995, 128
          %s1997 = scalar_lea.hbm %s2, %s1996
          %s1998 = sshll.u32 %s1985, 4
          %s1999 = int_to_ptr.vmem [resolvable:$true] %s1998
          %2004 = dma.vmem_to_hbm [thread:$0]  %s1999, 2048, %s1997, %s1982, 128, 128, 8
        $region36: #{tpu_custom_call.1} parent=27 // pred_fallthru
          _
      $region28: #{tpu_custom_call.1} parent=5 // pred_fallthru
        _
      %p2005 = scmp.le.s32.totalorder 2, %s11
      // Predicated region
      $region37: #{tpu_custom_call.1} parent=5 // pred_check
        %p2006 = pneg %p2005
      $region38: #{tpu_custom_call.1} parent=5 // pred_check_branch
        %2008 = sbr.rel (%p2006) target = $region40
      $region39: #{tpu_custom_call.1} parent=5 // pred_region
        %s2009 = ssub.s32 %s11, 2
        // Predicated region
        $region41: #{tpu_custom_call.1} parent=39 // pred_check
          %p2010 = pneg %p119
        $region42: #{tpu_custom_call.1} parent=39 // pred_check_branch
          %2012 = sbr.rel (%p2010) target = $region44
        $region43: #{tpu_custom_call.1} parent=39 // pred_region
          %s2013 = sand.u32 %s104, 1
          %s2014 = scalar_lea.sflag [#allocation4], %s2013
          %s2015 = sand.u32 %s104, 1
          %s2016 = smul.addr %s2015, 128
          %s2017 = scalar_lea.vmem [#allocation3], %s2016
          %2018 = dma.done %s2014, 2048
        $region44: #{tpu_custom_call.1} parent=39 // pred_fallthru
          _
      $region40: #{tpu_custom_call.1} parent=5 // pred_fallthru
        _
    $region6: #{tpu_custom_call.1} parent=1 // loop_footer
      %s15 = sadd.s32 1, %s11
    $region7: #{tpu_custom_call.1} parent=1 // loop_footer_branch
      %10 = sbr.rel target = $region3
    $region8: #{tpu_custom_call.1} parent=1 // loop_exit
      _
    %2019 = vsyncpa [#allocation4], 1
    %s2020 = scalar_lea.sflag [#allocation4], 1
    %2021 = vsyncpa %s2020, 1

</llo_original>
